<compile_context>
chip_gen: v7x
topology: tpu7x:2x2x1
jax: 0.10.0
libtpu: 0.0.40
codegen_flags: <defaults>
</compile_context>

<pallas_src>
import jax
import jax.numpy as jnp
from jax.experimental import pallas as pl
from jax.experimental.pallas import tpu as pltpu

NEG_SLOPE = 0.01  # F.leaky_relu_ default


def _pcn_kernel(p_ref, w1_ref, b1_ref, w2_ref, b2_ref, o_ref):
    # hollow 3x3 conv (in_channels=1) as (tm, 9) @ (9, 512); bf16 in, f32 acc
    h = jnp.dot(p_ref[...], w1_ref[...], preferred_element_type=jnp.float32)
    h = h + b1_ref[...]
    h = jnp.maximum(h, NEG_SLOPE * h)              # leaky relu, f32 on VPU
    # 1x1 conv as (tm, 512) @ (512, 256); bf16 operands, f32 accumulate
    o = jnp.dot(h.astype(jnp.bfloat16), w2_ref[...],
                preferred_element_type=jnp.float32)
    o = o + b2_ref[...]
    o_ref[...] = jnp.maximum(o, NEG_SLOPE * o).astype(o_ref.dtype)


def predict_center_net(x, w_hc, b_hc, w_conv, b_conv, *, tm=512, out_dtype=None):
    """x: (B, 1, H, W) NCHW float32.  Returns (B, 1, H, W, 256)."""
    B, C, H, W = x.shape
    assert C == 1
    Cmid = w_hc.shape[0]          # 512
    Cout = w_conv.shape[0]        # 256
    out_dtype = x.dtype if out_dtype is None else out_dtype

    # HollowConv2d: zero the center tap of the 3x3 weight.
    w_hc = w_hc.at[:, :, 1, 1].set(0.0)

    # im2col (glue, plain JAX): patches[b,h,w, kh*3+kw] = x_pad[b, h+kh, w+kw]
    # Stored as bf16 (matmul operand dtype) to halve the slab's HBM traffic.
    xp = jnp.pad(x[:, 0], ((0, 0), (1, 1), (1, 1)))
    taps = [xp[:, kh:kh + H, kw:kw + W] for kh in range(3) for kw in range(3)]
    patches = jnp.stack(taps, axis=-1).reshape(B * H * W, 9).astype(jnp.bfloat16)

    w1 = jnp.transpose(w_hc[:, 0].reshape(Cmid, 9)).astype(jnp.bfloat16)  # (9, Cmid)
    b1 = b_hc.reshape(1, Cmid).astype(jnp.float32)
    w2 = jnp.transpose(w_conv[:, :, 0, 0]).astype(jnp.bfloat16)           # (Cmid, Cout)
    b2 = b_conv.reshape(1, Cout).astype(jnp.float32)

    M = B * H * W
    # Keep at least 2 grid steps so the single parallel axis can shard across
    # v7x's two TensorCores; tm stays a multiple of 128 (MXU width on v5e).
    while tm > 128 and M <= tm:
        tm //= 2
    grid_m = pl.cdiv(M, tm)
    M_pad = grid_m * tm
    if M_pad != M:
        patches = jnp.pad(patches, ((0, M_pad - M), (0, 0)))

    out = pl.pallas_call(
        _pcn_kernel,
        out_shape=jax.ShapeDtypeStruct((M_pad, Cout), out_dtype),
        grid_spec=pltpu.PrefetchScalarGridSpec(
            num_scalar_prefetch=0,
            grid=(grid_m,),
            in_specs=[
                pl.BlockSpec((tm, 9), lambda i: (i, 0)),      # im2col rows (bf16)
                pl.BlockSpec((9, Cmid), lambda i: (0, 0)),    # hollow conv weight
                pl.BlockSpec((1, Cmid), lambda i: (0, 0)),    # hollow conv bias
                pl.BlockSpec((Cmid, Cout), lambda i: (0, 0)), # 1x1 conv weight
                pl.BlockSpec((1, Cout), lambda i: (0, 0)),    # 1x1 conv bias
            ],
            out_specs=pl.BlockSpec((tm, Cout), lambda i: (i, 0)),
        ),
        compiler_params=pltpu.CompilerParams(
            dimension_semantics=("parallel",),
            vmem_limit_bytes=32 * 1024 * 1024),
    )(patches, w1, b1, w2, b2)

    y = out[:M].reshape(B, H, W, Cout)
    return y[:, None]  # (B, 1, H, W, Cout)


def reference(x, w_hc, b_hc, w_conv, b_conv):
    """Pure-JAX f32 reference mirroring the PyTorch forward (NCHW)."""
    w_hc = w_hc.at[:, :, 1, 1].set(0.0)
    y = jax.lax.conv_general_dilated(
        x, w_hc, (1, 1), ((1, 1), (1, 1)),
        dimension_numbers=('NCHW', 'OIHW', 'NCHW')) + b_hc[None, :, None, None]
    y = jnp.where(y > 0, y, NEG_SLOPE * y)
    y = jax.lax.conv_general_dilated(
        y, w_conv, (1, 1), 'VALID',
        dimension_numbers=('NCHW', 'OIHW', 'NCHW')) + b_conv[None, :, None, None]
    y = jnp.where(y > 0, y, NEG_SLOPE * y)
    B, Cout, H, W = y.shape
    y = y.reshape(B, 1, Cout, H, W)
    return jnp.transpose(y, (0, 1, 3, 4, 2))


if __name__ == "__main__":
    key = jax.random.PRNGKey(0)
    k_x, k_w1, k_b1, k_w2, k_b2 = jax.random.split(key, 5)

    # Small spatial size; channel counts are fixed by the module (1->512->256).
    B, H, W = 2, 16, 16
    Cmid, Cout = 512, 256

    x = jax.random.normal(k_x, (B, 1, H, W), jnp.float32)
    w_hc = jax.random.normal(k_w1, (Cmid, 1, 3, 3), jnp.float32) * 0.1
    b_hc = jax.random.normal(k_b1, (Cmid,), jnp.float32) * 0.1
    w_conv = jax.random.normal(k_w2, (Cout, Cmid, 1, 1), jnp.float32) * 0.05
    b_conv = jax.random.normal(k_b2, (Cout,), jnp.float32) * 0.1

    y = jax.jit(predict_center_net)(x, w_hc, b_hc, w_conv, b_conv)
    y = jax.block_until_ready(y)

    y_ref = reference(x, w_hc, b_hc, w_conv, b_conv)
    assert y.shape == (B, 1, H, W, Cout), y.shape
    # bf16 matmul operands (f32 accumulate) -> looser tolerance vs f32 reference
    max_err = float(jnp.max(jnp.abs(y.astype(jnp.float32) - y_ref)))
    assert jnp.allclose(y.astype(jnp.float32), y_ref, atol=3e-2, rtol=3e-2), max_err

    print("KERNEL_OK")
</pallas_src>

<mosaic_0001>
module attributes {stable_mosaic.version = 11 : i64} {
  func.func @_pcn_kernel(%arg0: i32, %arg1: memref<256x9xbf16, #tpu.memory_space<vmem>>, %arg2: memref<9x512xbf16, #tpu.memory_space<vmem>>, %arg3: memref<1x512xf32, #tpu.memory_space<vmem>>, %arg4: memref<512x256xbf16, #tpu.memory_space<vmem>>, %arg5: memref<1x256xf32, #tpu.memory_space<vmem>>, %arg6: memref<256x256xf32, #tpu.memory_space<vmem>>) attributes {dimension_semantics = [#tpu.dimension_semantics<parallel>], iteration_bounds = array<i64: 2>, scalar_prefetch = 0 : i64, scratch_operands = 0 : i64, tpu.core_type = #tpu.core_type<tc>, window_params = [{transform_indices = @transform_0, window_bounds = array<i64: 256, 9>}, {pipeline_mode = #tpu.pipeline_mode<synchronous>, transform_indices = @transform_1, window_bounds = array<i64: 9, 512>}, {pipeline_mode = #tpu.pipeline_mode<synchronous>, transform_indices = @transform_2, window_bounds = array<i64: 1, 512>}, {pipeline_mode = #tpu.pipeline_mode<synchronous>, transform_indices = @transform_3, window_bounds = array<i64: 512, 256>}, {pipeline_mode = #tpu.pipeline_mode<synchronous>, transform_indices = @transform_4, window_bounds = array<i64: 1, 256>}, {transform_indices = @transform_5, window_bounds = array<i64: 256, 256>}]} {
    %c0 = arith.constant 0 : index
    %c0_0 = arith.constant 0 : index
    %0 = vector.load %arg1[%c0, %c0_0] : memref<256x9xbf16, #tpu.memory_space<vmem>>, vector<256x9xbf16>
    %c0_1 = arith.constant 0 : index
    %c0_2 = arith.constant 0 : index
    %1 = vector.load %arg2[%c0_1, %c0_2] : memref<9x512xbf16, #tpu.memory_space<vmem>>, vector<9x512xbf16>
    %cst = arith.constant dense<0.000000e+00> : vector<256x512xf32>
    %2 = tpu.matmul %0, %1, %cst {dimension_numbers = #tpu.dot_dimension_numbers<[1], [0], [0], [1], [0, 0, 1, 1], [], []>} : vector<256x9xbf16>, vector<9x512xbf16>, vector<256x512xf32> -> vector<256x512xf32>
    %c0_3 = arith.constant 0 : index
    %c0_4 = arith.constant 0 : index
    %3 = vector.load %arg3[%c0_3, %c0_4] : memref<1x512xf32, #tpu.memory_space<vmem>>, vector<1x512xf32>
    %4 = vector.broadcast %3 : vector<1x512xf32> to vector<256x512xf32>
    %5 = arith.addf %2, %4 : vector<256x512xf32>
    %cst_5 = arith.constant 0.00999999977 : f32
    %6 = vector.broadcast %cst_5 : f32 to vector<256x512xf32>
    %7 = arith.mulf %6, %5 : vector<256x512xf32>
    %8 = arith.maximumf %5, %7 : vector<256x512xf32>
    %9 = arith.truncf %8 : vector<256x512xf32> to vector<256x512xbf16>
    %c0_6 = arith.constant 0 : index
    %c0_7 = arith.constant 0 : index
    %10 = vector.load %arg4[%c0_6, %c0_7] : memref<512x256xbf16, #tpu.memory_space<vmem>>, vector<512x256xbf16>
    %cst_8 = arith.constant dense<0.000000e+00> : vector<256x256xf32>
    %11 = tpu.matmul %9, %10, %cst_8 {dimension_numbers = #tpu.dot_dimension_numbers<[1], [0], [0], [1], [0, 0, 1, 1], [], []>} : vector<256x512xbf16>, vector<512x256xbf16>, vector<256x256xf32> -> vector<256x256xf32>
    %c0_9 = arith.constant 0 : index
    %c0_10 = arith.constant 0 : index
    %12 = vector.load %arg5[%c0_9, %c0_10] : memref<1x256xf32, #tpu.memory_space<vmem>>, vector<1x256xf32>
    %13 = vector.broadcast %12 : vector<1x256xf32> to vector<256x256xf32>
    %14 = arith.addf %11, %13 : vector<256x256xf32>
    %cst_11 = arith.constant 0.00999999977 : f32
    %15 = vector.broadcast %cst_11 : f32 to vector<256x256xf32>
    %16 = arith.mulf %15, %14 : vector<256x256xf32>
    %17 = arith.maximumf %14, %16 : vector<256x256xf32>
    %c0_12 = arith.constant 0 : index
    %c0_13 = arith.constant 0 : index
    %18 = vector.load %arg6[%c0_12, %c0_13] : memref<256x256xf32, #tpu.memory_space<vmem>>, vector<256x256xf32>
    tpu.vector_store %arg6[%c0_12, %c0_13], %17 {strides = array<i32>} : memref<256x256xf32, #tpu.memory_space<vmem>>, vector<256x256xf32>,
    return
  }
  func.func @transform_0(%arg0: i32) -> (i32, i32) {
    %c0_i32 = arith.constant 0 : i32
    %c0_i32_0 = arith.constant 0 : i32
    return %arg0, %c0_i32 : i32, i32
  }
  func.func @transform_1(%arg0: i32) -> (i32, i32) {
    %c0_i32 = arith.constant 0 : i32
    %c0_i32_0 = arith.constant 0 : i32
    %c0_i32_1 = arith.constant 0 : i32
    return %c0_i32, %c0_i32_0 : i32, i32
  }
  func.func @transform_2(%arg0: i32) -> (i32, i32) {
    %c0_i32 = arith.constant 0 : i32
    %c0_i32_0 = arith.constant 0 : i32
    %c0_i32_1 = arith.constant 0 : i32
    return %c0_i32, %c0_i32_0 : i32, i32
  }
  func.func @transform_3(%arg0: i32) -> (i32, i32) {
    %c0_i32 = arith.constant 0 : i32
    %c0_i32_0 = arith.constant 0 : i32
    %c0_i32_1 = arith.constant 0 : i32
    return %c0_i32, %c0_i32_0 : i32, i32
  }
  func.func @transform_4(%arg0: i32) -> (i32, i32) {
    %c0_i32 = arith.constant 0 : i32
    %c0_i32_0 = arith.constant 0 : i32
    %c0_i32_1 = arith.constant 0 : i32
    return %c0_i32, %c0_i32_0 : i32, i32
  }
  func.func @transform_5(%arg0: i32) -> (i32, i32) {
    %c0_i32 = arith.constant 0 : i32
    %c0_i32_0 = arith.constant 0 : i32
    return %arg0, %c0_i32 : i32, i32
  }
}

</mosaic_0001>

<llo_original>
// kernel: predict_center_net.1
$region0: #{predict_center_net.1}
  #allocation0 [shape = 'u32[]', space=smem, size = 0x4, offset = 0x4, fixed_abs, tag = 'smem constant byte address 0x4 - core index']
  #allocation1 [shape = 'u32[144,128]{1,0:T(1,128)}', space=vmem, size = 0x12000, scoped, tag = 'internal scratch']
  %s0 = inlined_call_operand.vmem [shape: bf16[512,9], index: 0, kind: input, shape index: {}]
  %s1 = inlined_call_operand.vmem [shape: bf16[9,512], index: 1, kind: input, shape index: {}]
  %s2 = inlined_call_operand.vmem [shape: f32[1,512], index: 2, kind: input, shape index: {}]
  %s3 = inlined_call_operand.vmem [shape: bf16[512,256], index: 3, kind: input, shape index: {}]
  %s4 = inlined_call_operand.vmem [shape: f32[1,256], index: 4, kind: input, shape index: {}]
  %s5 = inlined_call_operand.hbm [shape: f32[512,256], index: 5, kind: output, shape index: {}]
  %s6 = sld [smem:[#allocation0]]
  $region53: #{predict_center_net.1} parent=0
    _
  %s8 = ssub.s32 1, %s6
  %s9 = scalar_select 0, %s8, %s6
  $region1: #{predict_center_net.1} parent=0
    #allocation2 [shape = 'u8[524288]{0}', space=vmem, size = 0x80000, scoped, tag = 'output window, operand 0']
    #allocation3 [shape = 's32[2]{0}', space=sflag, size = 0x8, scoped, tag = 'scoped memory for predict_center_net.1']
    %10 = vsyncpa [#allocation3], 0
    %s11 = scalar_lea.sflag [#allocation3], 1
    %12 = vsyncpa %s11, 0
    loop: start=0, step=1, limit=4
    $region2: #{predict_center_net.1} parent=1 // loop_pre_header
      _
    $region3: #{predict_center_net.1} parent=1 // loop_header
      %s14 = sphi 0, %s18
      %p15 = scmp.ge.s32.totalorder %s14, 4
      %s24 = sphi 0, %s26
      %s27 = sphi 0, %s24
      %s28 = sphi 0, %s27
      %s44 = sphi 0, %s28
      %s48 = sphi 0, %s48
      %s50 = sphi 0, %s48
      %s51 = sphi 0, %s50
      %s65 = sphi 0, %s51
      %s69 = sphi 0, %s69
      %s71 = sphi 0, %s69
      %s72 = sphi 0, %s71
      %s86 = sphi 0, %s72
      %s90 = sphi 0, %s90
      %s92 = sphi 0, %s90
      %s93 = sphi 0, %s92
      %s107 = sphi 0, %s93
      %s111 = sphi 0, %s111
      %s113 = sphi 0, %s111
      %s114 = sphi 0, %s113
      %s128 = sphi 0, %s114
      %s134 = sphi 0, %s136
      %s137 = sphi 0, %s134
      %s138 = sphi 0, %s137
      %s154 = sphi 0, %s138
    $region4: #{predict_center_net.1} parent=1 // loop_header_branch
      %17 = sbr.rel (%p15) target = $region8
    $region5: #{predict_center_net.1} parent=1 // loop_body
      %s19 = ssub.s32 %s14, 1
      %s20 = ssub.s32 %s14, 2
      %s21 = sadd.s32 %s14, 1
      %s22 = ssub.s32 %s14, %s21
      %p23 = scmp.eq.s32.totalorder %s22, 0
      %s25 = sadd.s32 %s24, 1
      %s26 = scalar_select %p23, %s24, %s25
      %p29 = pneg %p23
      %p30 = scmp.eq.s32.totalorder %s14, 1
      %p31 = por %p29, %p30
      %p32 = scmp.ne.s32.totalorder %s24, %s27
      %p33 = scmp.eq.s32.totalorder %s14, 0
      %p34 = por %p32, %p33
      %p35 = scmp.ne.s32.totalorder %s24, %s27
      %p36 = scmp.eq.s32.totalorder %s19, 1
      %p37 = por %p35, %p36
      %p38 = scmp.ne.s32.totalorder %s27, %s28
      %p39 = scmp.eq.s32.totalorder %s19, 0
      %p40 = por %p38, %p39
      %p41 = scmp.ne.s32.totalorder %s27, %s28
      %p42 = scmp.eq.s32.totalorder %s20, 1
      %p43 = por %p41, %p42
      %p45 = scmp.ne.s32.totalorder %s28, %s44
      %p46 = scmp.eq.s32.totalorder %s20, 0
      %p47 = por %p45, %p46
      %s49 = sadd.s32 %s48, 1
      %p52 = scmp.eq.s32.totalorder %s14, 1
      %p53 = scmp.ne.s32.totalorder %s48, %s50
      %p54 = scmp.eq.s32.totalorder %s14, 0
      %p55 = por %p53, %p54
      %p56 = scmp.ne.s32.totalorder %s48, %s50
      %p57 = scmp.eq.s32.totalorder %s19, 1
      %p58 = por %p56, %p57
      %p59 = scmp.ne.s32.totalorder %s50, %s51
      %p60 = scmp.eq.s32.totalorder %s19, 0
      %p61 = por %p59, %p60
      %p62 = scmp.ne.s32.totalorder %s50, %s51
      %p63 = scmp.eq.s32.totalorder %s20, 1
      %p64 = por %p62, %p63
      %p66 = scmp.ne.s32.totalorder %s51, %s65
      %p67 = scmp.eq.s32.totalorder %s20, 0
      %p68 = por %p66, %p67
      %s70 = sadd.s32 %s69, 1
      %p73 = scmp.eq.s32.totalorder %s14, 1
      %p74 = scmp.ne.s32.totalorder %s69, %s71
      %p75 = scmp.eq.s32.totalorder %s14, 0
      %p76 = por %p74, %p75
      %p77 = scmp.ne.s32.totalorder %s69, %s71
      %p78 = scmp.eq.s32.totalorder %s19, 1
      %p79 = por %p77, %p78
      %p80 = scmp.ne.s32.totalorder %s71, %s72
      %p81 = scmp.eq.s32.totalorder %s19, 0
      %p82 = por %p80, %p81
      %p83 = scmp.ne.s32.totalorder %s71, %s72
      %p84 = scmp.eq.s32.totalorder %s20, 1
      %p85 = por %p83, %p84
      %p87 = scmp.ne.s32.totalorder %s72, %s86
      %p88 = scmp.eq.s32.totalorder %s20, 0
      %p89 = por %p87, %p88
      %s91 = sadd.s32 %s90, 1
      %p94 = scmp.eq.s32.totalorder %s14, 1
      %p95 = scmp.ne.s32.totalorder %s90, %s92
      %p96 = scmp.eq.s32.totalorder %s14, 0
      %p97 = por %p95, %p96
      %p98 = scmp.ne.s32.totalorder %s90, %s92
      %p99 = scmp.eq.s32.totalorder %s19, 1
      %p100 = por %p98, %p99
      %p101 = scmp.ne.s32.totalorder %s92, %s93
      %p102 = scmp.eq.s32.totalorder %s19, 0
      %p103 = por %p101, %p102
      %p104 = scmp.ne.s32.totalorder %s92, %s93
      %p105 = scmp.eq.s32.totalorder %s20, 1
      %p106 = por %p104, %p105
      %p108 = scmp.ne.s32.totalorder %s93, %s107
      %p109 = scmp.eq.s32.totalorder %s20, 0
      %p110 = por %p108, %p109
      %s112 = sadd.s32 %s111, 1
      %p115 = scmp.eq.s32.totalorder %s14, 1
      %p116 = scmp.ne.s32.totalorder %s111, %s113
      %p117 = scmp.eq.s32.totalorder %s14, 0
      %p118 = por %p116, %p117
      %p119 = scmp.ne.s32.totalorder %s111, %s113
      %p120 = scmp.eq.s32.totalorder %s19, 1
      %p121 = por %p119, %p120
      %p122 = scmp.ne.s32.totalorder %s113, %s114
      %p123 = scmp.eq.s32.totalorder %s19, 0
      %p124 = por %p122, %p123
      %p125 = scmp.ne.s32.totalorder %s113, %s114
      %p126 = scmp.eq.s32.totalorder %s20, 1
      %p127 = por %p125, %p126
      %p129 = scmp.ne.s32.totalorder %s114, %s128
      %p130 = scmp.eq.s32.totalorder %s20, 0
      %p131 = por %p129, %p130
      %s132 = ssub.s32 %s14, %s21
      %p133 = scmp.eq.s32.totalorder %s132, 0
      %s135 = sadd.s32 %s134, 1
      %s136 = scalar_select %p133, %s134, %s135
      %p139 = pneg %p133
      %p140 = scmp.eq.s32.totalorder %s14, 1
      %p141 = por %p139, %p140
      %p142 = scmp.ne.s32.totalorder %s134, %s137
      %p143 = scmp.eq.s32.totalorder %s14, 0
      %p144 = por %p142, %p143
      %p145 = scmp.ne.s32.totalorder %s134, %s137
      %p146 = scmp.eq.s32.totalorder %s19, 1
      %p147 = por %p145, %p146
      %p148 = scmp.ne.s32.totalorder %s137, %s138
      %p149 = scmp.eq.s32.totalorder %s19, 0
      %p150 = por %p148, %p149
      %p151 = scmp.ne.s32.totalorder %s137, %s138
      %p152 = scmp.eq.s32.totalorder %s20, 1
      %p153 = por %p151, %p152
      %p155 = scmp.ne.s32.totalorder %s138, %s154
      %p156 = scmp.eq.s32.totalorder %s20, 0
      %p157 = por %p155, %p156
      %p158 = scmp.le.s32.totalorder 1, %s14
      %p159 = scmp.lt.s32.totalorder %s14, 3
      %p160 = pnand %p158, %p159
      %p161 = pneg %p160
      // Predicated region
      $region9: #{predict_center_net.1} parent=5 // pred_check
        _
      $region10: #{predict_center_net.1} parent=5 // pred_check_branch
        %163 = sbr.rel (%p160) target = $region12
      $region11: #{predict_center_net.1} parent=5 // pred_region
        %s164 = ssub.s32 %s14, 1
        // Predicated region
        $region13: #{predict_center_net.1} parent=11 // pred_check
          %p165 = pneg %p61
        $region14: #{predict_center_net.1} parent=11 // pred_check_branch
          %167 = sbr.rel (%p165) target = $region16
        $region15: #{predict_center_net.1} parent=11 // pred_region
          _
        $region16: #{predict_center_net.1} parent=11 // pred_fallthru
          _
        // Predicated region
        $region17: #{predict_center_net.1} parent=11 // pred_check
          %p168 = pneg %p82
        $region18: #{predict_center_net.1} parent=11 // pred_check_branch
          %170 = sbr.rel (%p168) target = $region20
        $region19: #{predict_center_net.1} parent=11 // pred_region
          _
        $region20: #{predict_center_net.1} parent=11 // pred_fallthru
          _
        // Predicated region
        $region21: #{predict_center_net.1} parent=11 // pred_check
          %p171 = pneg %p103
        $region22: #{predict_center_net.1} parent=11 // pred_check_branch
          %173 = sbr.rel (%p171) target = $region24
        $region23: #{predict_center_net.1} parent=11 // pred_region
          _
        $region24: #{predict_center_net.1} parent=11 // pred_fallthru
          _
        // Predicated region
        $region25: #{predict_center_net.1} parent=11 // pred_check
          %p174 = pneg %p124
        $region26: #{predict_center_net.1} parent=11 // pred_check_branch
          %176 = sbr.rel (%p174) target = $region28
        $region27: #{predict_center_net.1} parent=11 // pred_region
          _
        $region28: #{predict_center_net.1} parent=11 // pred_fallthru
          _
      $region12: #{predict_center_net.1} parent=5 // pred_fallthru
        _
      %p177 = scmp.lt.s32.totalorder %s14, 2
      // Predicated region
      $region29: #{predict_center_net.1} parent=5 // pred_check
        %p178 = pneg %p177
      $region30: #{predict_center_net.1} parent=5 // pred_check_branch
        %180 = sbr.rel (%p178) target = $region32
      $region31: #{predict_center_net.1} parent=5 // pred_region
        // Predicated region
        $region33: #{predict_center_net.1} parent=31 // pred_check
          %p181 = pneg %p34
        $region34: #{predict_center_net.1} parent=31 // pred_check_branch
          %183 = sbr.rel (%p181) target = $region36
        $region35: #{predict_center_net.1} parent=31 // pred_region
          %s184 = smul.u32 32, %s14
          %p185 = scmp.lt.s32.totalorder %s184, 63
          %s186 = scalar_select %p185, %s184, 63
          %s187 = smul.addr %s186, 4
          %s188 = scalar_lea.vmem %s0, %s187
          %s189 = smul.u32 32, %s14
        $region36: #{predict_center_net.1} parent=31 // pred_fallthru
          _
      $region32: #{predict_center_net.1} parent=5 // pred_fallthru
        _
      %p190 = scmp.le.s32.totalorder 1, %s14
      %p191 = scmp.lt.s32.totalorder %s14, 3
      %p192 = pnand %p190, %p191
      %p193 = pneg %p192
      // Predicated region
      $region37: #{predict_center_net.1} parent=5 // pred_check
        _
      $region38: #{predict_center_net.1} parent=5 // pred_check_branch
        %195 = sbr.rel (%p192) target = $region40
      $region39: #{predict_center_net.1} parent=5 // pred_region
        %s196 = ssub.s32 %s14, 1
        %s197 = smul.u32 32, %s19
        %p198 = scmp.lt.s32.totalorder %s197, 63
        %s199 = scalar_select %p198, %s197, 63
        %s200 = smul.addr %s199, 4
        %s201 = scalar_lea.vmem %s0, %s200
        %p202 = pneg %p40
        %p203 = pneg %p37
        %p204 = pneg %p61
        %p205 = pneg %p58
        %p206 = pneg %p82
        %p207 = pneg %p79
        %p208 = pneg %p103
        %p209 = pneg %p100
        %p210 = pneg %p124
        %p211 = pneg %p121
        %p212 = pneg %p150
        %p213 = pneg %p147
        %s214 = sand.u32 %s137, 1
        %s215 = scalar_lea.sflag [#allocation3], %s214
        %s216 = sand.u32 %s137, 1
        %s217 = smul.addr %s216, 512
        %s218 = scalar_lea.vmem [#allocation2], %s217
        %s219 = smul.u32 32, %s19
        %p220 = scmp.lt.s32.totalorder %s219, 63
        %s221 = scalar_select %p220, %s219, 63
        %s222 = smul.addr %s221, 4
        %s223 = scalar_lea.vmem %s0, %s222
        %s224 = smul.u32 32, %s19
        %s225 = smul.u32 32, %s19
        %v227 = vld [vmem:[%s223] sm:$0xf]
        %v228 = vld [vmem:[%s223 + $0x4] sm:$0xf]
        %v229 = vld [vmem:[%s223 + $0x8] sm:$0xf]
        %v230 = vld [vmem:[%s223 + $0xc] sm:$0xf]
        %v231 = vld [vmem:[%s223 + $0x10] sm:$0xf]
        %v232 = vld [vmem:[%s223 + $0x14] sm:$0xf]
        %v233 = vld [vmem:[%s223 + $0x18] sm:$0xf]
        %v234 = vld [vmem:[%s223 + $0x1c] sm:$0xf]
        %v235 = vld [vmem:[%s223 + $0x20] sm:$0xf]
        %v236 = vld [vmem:[%s223 + $0x24] sm:$0xf]
        %v237 = vld [vmem:[%s223 + $0x28] sm:$0xf]
        %v238 = vld [vmem:[%s223 + $0x2c] sm:$0xf]
        %v239 = vld [vmem:[%s223 + $0x30] sm:$0xf]
        %v240 = vld [vmem:[%s223 + $0x34] sm:$0xf]
        %v241 = vld [vmem:[%s223 + $0x38] sm:$0xf]
        %v242 = vld [vmem:[%s223 + $0x3c] sm:$0xf]
        %v243 = vld [vmem:[%s223 + $0x40] sm:$0xf]
        %v244 = vld [vmem:[%s223 + $0x44] sm:$0xf]
        %v245 = vld [vmem:[%s223 + $0x48] sm:$0xf]
        %v246 = vld [vmem:[%s223 + $0x4c] sm:$0xf]
        %v247 = vld [vmem:[%s223 + $0x50] sm:$0xf]
        %v248 = vld [vmem:[%s223 + $0x54] sm:$0xf]
        %v249 = vld [vmem:[%s223 + $0x58] sm:$0xf]
        %v250 = vld [vmem:[%s223 + $0x5c] sm:$0xf]
        %v251 = vld [vmem:[%s223 + $0x60] sm:$0xf]
        %v252 = vld [vmem:[%s223 + $0x64] sm:$0xf]
        %v253 = vld [vmem:[%s223 + $0x68] sm:$0xf]
        %v254 = vld [vmem:[%s223 + $0x6c] sm:$0xf]
        %v255 = vld [vmem:[%s223 + $0x70] sm:$0xf]
        %v256 = vld [vmem:[%s223 + $0x74] sm:$0xf]
        %v257 = vld [vmem:[%s223 + $0x78] sm:$0xf]
        %v258 = vld [vmem:[%s223 + $0x7c] sm:$0xf]
        %v259 = vld [vmem:[%s1] sm:$0xff]
        %v260 = vld [vmem:[%s1 + $0x8] sm:$0xff]
        %v261 = vld [vmem:[%s1 + $0x10] sm:$0x11]
        %v262 = vld [vmem:[%s1 + $0x18] sm:$0x11]
        %v263 = vld [vmem:[%s2] sm:$0xf]
        %v265 = vlaneseq
        %v266 = vshrl.u32 %v265, 7
        %v267 = vsub.s32 0, %v266
        %v268 = vrot.slane %v263, %v267
        %v269 = vlaneseq
        %v270 = vshrl.u32 %v269, 7
        %v271 = vsub.s32 1, %v270
        %v272 = vrot.slane %v263, %v271
        %v273 = vlaneseq
        %v274 = vshrl.u32 %v273, 7
        %v275 = vsub.s32 2, %v274
        %v276 = vrot.slane %v263, %v275
        %v277 = vlaneseq
        %v278 = vshrl.u32 %v277, 7
        %v279 = vsub.s32 3, %v278
        %v280 = vrot.slane %v263, %v279
        %v317 = vunpack.c.l.b16 %v227
        %v318 = vunpack.c.l.b16 %v228
        %v319 = vunpack.c.l.b16 %v229
        %v320 = vunpack.c.l.b16 %v230
        %v321 = vunpack.c.l.b16 %v231
        %v322 = vunpack.c.l.b16 %v232
        %v323 = vunpack.c.l.b16 %v233
        %v324 = vunpack.c.l.b16 %v234
        %v325 = vunpack.c.l.b16 %v235
        %v326 = vunpack.c.l.b16 %v236
        %v327 = vunpack.c.l.b16 %v237
        %v328 = vunpack.c.l.b16 %v238
        %v329 = vunpack.c.l.b16 %v239
        %v330 = vunpack.c.l.b16 %v240
        %v331 = vunpack.c.l.b16 %v241
        %v332 = vunpack.c.l.b16 %v242
        %v333 = vunpack.c.l.b16 %v243
        %v334 = vunpack.c.l.b16 %v244
        %v335 = vunpack.c.l.b16 %v245
        %v336 = vunpack.c.l.b16 %v246
        %v337 = vunpack.c.l.b16 %v247
        %v338 = vunpack.c.l.b16 %v248
        %v339 = vunpack.c.l.b16 %v249
        %v340 = vunpack.c.l.b16 %v250
        %v341 = vunpack.c.l.b16 %v251
        %v342 = vunpack.c.l.b16 %v252
        %v343 = vunpack.c.l.b16 %v253
        %v344 = vunpack.c.l.b16 %v254
        %v345 = vunpack.c.l.b16 %v255
        %v346 = vunpack.c.l.b16 %v256
        %v347 = vunpack.c.l.b16 %v257
        %v348 = vunpack.c.l.b16 %v258
        %v349 = vpack.c.b16 %v318, %v317
        %v350 = vpack.c.b16 %v320, %v319
        %v351 = vpack.c.b16 %v322, %v321
        %v352 = vpack.c.b16 %v324, %v323
        %v353 = vpack.c.b16 %v326, %v325
        %v354 = vpack.c.b16 %v328, %v327
        %v355 = vpack.c.b16 %v330, %v329
        %v356 = vpack.c.b16 %v332, %v331
        %v357 = vpack.c.b16 %v334, %v333
        %v358 = vpack.c.b16 %v336, %v335
        %v359 = vpack.c.b16 %v338, %v337
        %v360 = vpack.c.b16 %v340, %v339
        %v361 = vpack.c.b16 %v342, %v341
        %v362 = vpack.c.b16 %v344, %v343
        %v363 = vpack.c.b16 %v346, %v345
        %v364 = vpack.c.b16 %v348, %v347
        %v369 = vunpack.c.l.b16 %v259
        %v370 = vunpack.c.h.b16 %v259
        %v371 = vunpack.c.l.b16 %v260
        %v372 = vunpack.c.h.b16 %v260
        %v373 = vunpack.c.l.b16 %v261
        %v374 = vunpack.c.h.b16 %v261
        %v375 = vunpack.c.l.b16 %v262
        %v376 = vunpack.c.h.b16 %v262
        %v377 = vpack.c.b16 %v373, %v369
        %v378 = vpack.c.b16 %v374, %v370
        %v379 = vpack.c.b16 %v375, %v371
        %v380 = vpack.c.b16 %v376, %v372
        %vm381 = vcmask 72704
        %v383 = vsel %vm381, %v349, 0
        %v386 = vsel %vm381, %v350, 0
        %v389 = vsel %vm381, %v351, 0
        %v392 = vsel %vm381, %v352, 0
        %v395 = vsel %vm381, %v353, 0
        %v398 = vsel %vm381, %v354, 0
        %v401 = vsel %vm381, %v355, 0
        %v404 = vsel %vm381, %v356, 0
        %v407 = vsel %vm381, %v357, 0
        %v410 = vsel %vm381, %v358, 0
        %v413 = vsel %vm381, %v359, 0
        %v416 = vsel %vm381, %v360, 0
        %v419 = vsel %vm381, %v361, 0
        %v422 = vsel %vm381, %v362, 0
        %v425 = vsel %vm381, %v363, 0
        %v428 = vsel %vm381, %v364, 0
        %vm430 = vcmask 1043456
        %vm431 = vcmask 1044480
        %v432 = vsel %vm430, 4294967295, 65535
        %v433 = vsel %vm431, %v432, 0
        %v435 = vand.u32 %v377, %v433
        %v438 = vand.u32 %v378, %v433
        %v441 = vand.u32 %v379, %v433
        %v444 = vand.u32 %v380, %v433
        %446 = vmatprep.subr.bf16.mxu0 %v438
        %447 = vmatpush1.bf16.msra.mxu0 %v435
        %448 = vmatprep.subr.bf16.mxu0 0
        %449 = vmatpush1.bf16.msra.mxu0 0
        %450 = vmatprep.subr.bf16.mxu0 0
        %451 = vmatpush1.bf16.msra.mxu0 0
        %452 = vmatprep.subr.bf16.mxu0 0
        %453 = vmatpush1.bf16.msra.mxu0 0
        %454 = vmatprep.subr.bf16.mxu0 0
        %455 = vmatpush1.bf16.msra.mxu0 0
        %456 = vmatprep.subr.bf16.mxu0 0
        %457 = vmatpush1.bf16.msra.mxu0 0
        %458 = vmatprep.subr.bf16.mxu0 0
        %459 = vmatpush1.bf16.msra.mxu0 0
        %460 = vmatprep.subr.bf16.mxu0 0
        %461 = vmatpush1.bf16.msra.mxu0 0
        %462 = vmatprep.subr.bf16.mxu0 0
        %463 = vmatpush1.bf16.msra.mxu0 0
        %464 = vmatprep.subr.bf16.mxu0 0
        %465 = vmatpush1.bf16.msra.mxu0 0
        %466 = vmatprep.subr.bf16.mxu0 0
        %467 = vmatpush1.bf16.msra.mxu0 0
        %468 = vmatprep.subr.bf16.mxu0 0
        %469 = vmatpush1.bf16.msra.mxu0 0
        %470 = vmatprep.subr.bf16.mxu0 0
        %471 = vmatpush1.bf16.msra.mxu0 0
        %472 = vmatprep.subr.bf16.mxu0 0
        %473 = vmatpush1.bf16.msra.mxu0 0
        %474 = vmatprep.subr.bf16.mxu0 0
        %475 = vmatpush1.bf16.msra.mxu0 0
        %476 = vmatprep.subr.bf16.mxu0 0
        %477 = vmatpush1.bf16.msra.mxu0 0
        %478 = vmatprep.mubr.bf16.mxu0 0
        %479 = vmatmul.mubr.bf16.gmra.mrb[0].mxu0 %v383
        %v480 = vpop.f32.mrb[0].mxu0
        %v481 = vadd.f32 %v268, %v480
        %v482 = vpop.f32.mrb[0].mxu0
        %v483 = vadd.f32 %v272, %v482
        %v484 = vpop.f32.mrb[0].mxu0
        %v485 = vadd.f32 %v268, %v484
        %v486 = vpop.f32.mrb[0].mxu0
        %v487 = vadd.f32 %v272, %v486
        %488 = vmatprep.mubr.bf16.mxu0 0
        %489 = vmatmul.mubr.bf16.gmra.mrb[0].mxu0 %v386
        %v490 = vpop.f32.mrb[0].mxu0
        %v491 = vadd.f32 %v268, %v490
        %v492 = vpop.f32.mrb[0].mxu0
        %v493 = vadd.f32 %v272, %v492
        %v494 = vpop.f32.mrb[0].mxu0
        %v495 = vadd.f32 %v268, %v494
        %v496 = vpop.f32.mrb[0].mxu0
        %v497 = vadd.f32 %v272, %v496
        %498 = vmatprep.mubr.bf16.mxu0 0
        %499 = vmatmul.mubr.bf16.gmra.mrb[0].mxu0 %v389
        %v500 = vpop.f32.mrb[0].mxu0
        %v501 = vadd.f32 %v268, %v500
        %v502 = vpop.f32.mrb[0].mxu0
        %v503 = vadd.f32 %v272, %v502
        %v504 = vpop.f32.mrb[0].mxu0
        %v505 = vadd.f32 %v268, %v504
        %v506 = vpop.f32.mrb[0].mxu0
        %v507 = vadd.f32 %v272, %v506
        %508 = vmatprep.mubr.bf16.mxu0 0
        %509 = vmatmul.mubr.bf16.gmra.mrb[0].mxu0 %v392
        %v510 = vpop.f32.mrb[0].mxu0
        %v511 = vadd.f32 %v268, %v510
        %v512 = vpop.f32.mrb[0].mxu0
        %v513 = vadd.f32 %v272, %v512
        %v514 = vpop.f32.mrb[0].mxu0
        %v515 = vadd.f32 %v268, %v514
        %v516 = vpop.f32.mrb[0].mxu0
        %v517 = vadd.f32 %v272, %v516
        %518 = vmatprep.mubr.bf16.mxu0 0
        %519 = vmatmul.mubr.bf16.gmra.mrb[0].mxu0 %v395
        %v520 = vpop.f32.mrb[0].mxu0
        %v521 = vadd.f32 %v268, %v520
        %v522 = vpop.f32.mrb[0].mxu0
        %v523 = vadd.f32 %v272, %v522
        %v524 = vpop.f32.mrb[0].mxu0
        %v525 = vadd.f32 %v268, %v524
        %v526 = vpop.f32.mrb[0].mxu0
        %v527 = vadd.f32 %v272, %v526
        %528 = vmatprep.mubr.bf16.mxu0 0
        %529 = vmatmul.mubr.bf16.gmra.mrb[0].mxu0 %v398
        %v530 = vpop.f32.mrb[0].mxu0
        %v531 = vadd.f32 %v268, %v530
        %v532 = vpop.f32.mrb[0].mxu0
        %v533 = vadd.f32 %v272, %v532
        %v534 = vpop.f32.mrb[0].mxu0
        %v535 = vadd.f32 %v268, %v534
        %v536 = vpop.f32.mrb[0].mxu0
        %v537 = vadd.f32 %v272, %v536
        %538 = vmatprep.mubr.bf16.mxu0 0
        %539 = vmatmul.mubr.bf16.gmra.mrb[0].mxu0 %v401
        %v540 = vpop.f32.mrb[0].mxu0
        %v541 = vadd.f32 %v268, %v540
        %v542 = vpop.f32.mrb[0].mxu0
        %v543 = vadd.f32 %v272, %v542
        %v544 = vpop.f32.mrb[0].mxu0
        %v545 = vadd.f32 %v268, %v544
        %v546 = vpop.f32.mrb[0].mxu0
        %v547 = vadd.f32 %v272, %v546
        %548 = vmatprep.mubr.bf16.mxu0 0
        %549 = vmatmul.mubr.bf16.gmra.mrb[0].mxu0 %v404
        %v550 = vpop.f32.mrb[0].mxu0
        %v551 = vadd.f32 %v268, %v550
        %v552 = vpop.f32.mrb[0].mxu0
        %v553 = vadd.f32 %v272, %v552
        %v554 = vpop.f32.mrb[0].mxu0
        %v555 = vadd.f32 %v268, %v554
        %v556 = vpop.f32.mrb[0].mxu0
        %v557 = vadd.f32 %v272, %v556
        %558 = vmatprep.mubr.bf16.mxu0 0
        %559 = vmatmul.mubr.bf16.gmra.mrb[0].mxu0 %v407
        %v560 = vpop.f32.mrb[0].mxu0
        %v561 = vadd.f32 %v268, %v560
        %v562 = vpop.f32.mrb[0].mxu0
        %v563 = vadd.f32 %v272, %v562
        %v564 = vpop.f32.mrb[0].mxu0
        %v565 = vadd.f32 %v268, %v564
        %v566 = vpop.f32.mrb[0].mxu0
        %v567 = vadd.f32 %v272, %v566
        %568 = vmatprep.mubr.bf16.mxu0 0
        %569 = vmatmul.mubr.bf16.gmra.mrb[0].mxu0 %v410
        %v570 = vpop.f32.mrb[0].mxu0
        %v571 = vadd.f32 %v268, %v570
        %v572 = vpop.f32.mrb[0].mxu0
        %v573 = vadd.f32 %v272, %v572
        %v574 = vpop.f32.mrb[0].mxu0
        %v575 = vadd.f32 %v268, %v574
        %v576 = vpop.f32.mrb[0].mxu0
        %v577 = vadd.f32 %v272, %v576
        %578 = vmatprep.mubr.bf16.mxu0 0
        %579 = vmatmul.mubr.bf16.gmra.mrb[0].mxu0 %v413
        %v580 = vpop.f32.mrb[0].mxu0
        %v581 = vadd.f32 %v268, %v580
        %v582 = vpop.f32.mrb[0].mxu0
        %v583 = vadd.f32 %v272, %v582
        %v584 = vpop.f32.mrb[0].mxu0
        %v585 = vadd.f32 %v268, %v584
        %v586 = vpop.f32.mrb[0].mxu0
        %v587 = vadd.f32 %v272, %v586
        %588 = vmatprep.mubr.bf16.mxu0 0
        %589 = vmatmul.mubr.bf16.gmra.mrb[0].mxu0 %v416
        %v590 = vpop.f32.mrb[0].mxu0
        %v591 = vadd.f32 %v268, %v590
        %v592 = vpop.f32.mrb[0].mxu0
        %v593 = vadd.f32 %v272, %v592
        %v594 = vpop.f32.mrb[0].mxu0
        %v595 = vadd.f32 %v268, %v594
        %v596 = vpop.f32.mrb[0].mxu0
        %v597 = vadd.f32 %v272, %v596
        %598 = vmatprep.mubr.bf16.mxu0 0
        %599 = vmatmul.mubr.bf16.gmra.mrb[0].mxu0 %v419
        %v600 = vpop.f32.mrb[0].mxu0
        %v601 = vadd.f32 %v268, %v600
        %v602 = vpop.f32.mrb[0].mxu0
        %v603 = vadd.f32 %v272, %v602
        %v604 = vpop.f32.mrb[0].mxu0
        %v605 = vadd.f32 %v268, %v604
        %v606 = vpop.f32.mrb[0].mxu0
        %v607 = vadd.f32 %v272, %v606
        %608 = vmatprep.mubr.bf16.mxu0 0
        %609 = vmatmul.mubr.bf16.gmra.mrb[0].mxu0 %v422
        %v610 = vpop.f32.mrb[0].mxu0
        %v611 = vadd.f32 %v268, %v610
        %v612 = vpop.f32.mrb[0].mxu0
        %v613 = vadd.f32 %v272, %v612
        %v614 = vpop.f32.mrb[0].mxu0
        %v615 = vadd.f32 %v268, %v614
        %v616 = vpop.f32.mrb[0].mxu0
        %v617 = vadd.f32 %v272, %v616
        %618 = vmatprep.mubr.bf16.mxu0 0
        %619 = vmatmul.mubr.bf16.gmra.mrb[0].mxu0 %v425
        %v620 = vpop.f32.mrb[0].mxu0
        %v621 = vadd.f32 %v268, %v620
        %v622 = vpop.f32.mrb[0].mxu0
        %v623 = vadd.f32 %v272, %v622
        %v624 = vpop.f32.mrb[0].mxu0
        %v625 = vadd.f32 %v268, %v624
        %v626 = vpop.f32.mrb[0].mxu0
        %v627 = vadd.f32 %v272, %v626
        %628 = vmatprep.mubr.bf16.mxu0 0
        %629 = vmatmul.mubr.bf16.gmra.mrb[0].mxu0 %v428
        %v630 = vpop.f32.mrb[0].mxu0
        %v631 = vadd.f32 %v268, %v630
        %v632 = vpop.f32.mrb[0].mxu0
        %v633 = vadd.f32 %v272, %v632
        %v634 = vpop.f32.mrb[0].mxu0
        %v635 = vadd.f32 %v268, %v634
        %v636 = vpop.f32.mrb[0].mxu0
        %v637 = vadd.f32 %v272, %v636
        %638 = vdwg.mxu0
        %639 = vmatprep.subr.bf16.mxu0 %v444
        %640 = vmatpush1.bf16.msra.mxu0 %v441
        %641 = vmatprep.subr.bf16.mxu0 0
        %642 = vmatpush1.bf16.msra.mxu0 0
        %643 = vmatprep.subr.bf16.mxu0 0
        %644 = vmatpush1.bf16.msra.mxu0 0
        %645 = vmatprep.subr.bf16.mxu0 0
        %646 = vmatpush1.bf16.msra.mxu0 0
        %647 = vmatprep.subr.bf16.mxu0 0
        %648 = vmatpush1.bf16.msra.mxu0 0
        %649 = vmatprep.subr.bf16.mxu0 0
        %650 = vmatpush1.bf16.msra.mxu0 0
        %651 = vmatprep.subr.bf16.mxu0 0
        %652 = vmatpush1.bf16.msra.mxu0 0
        %653 = vmatprep.subr.bf16.mxu0 0
        %654 = vmatpush1.bf16.msra.mxu0 0
        %655 = vmatprep.subr.bf16.mxu0 0
        %656 = vmatpush1.bf16.msra.mxu0 0
        %657 = vmatprep.subr.bf16.mxu0 0
        %658 = vmatpush1.bf16.msra.mxu0 0
        %659 = vmatprep.subr.bf16.mxu0 0
        %660 = vmatpush1.bf16.msra.mxu0 0
        %661 = vmatprep.subr.bf16.mxu0 0
        %662 = vmatpush1.bf16.msra.mxu0 0
        %663 = vmatprep.subr.bf16.mxu0 0
        %664 = vmatpush1.bf16.msra.mxu0 0
        %665 = vmatprep.subr.bf16.mxu0 0
        %666 = vmatpush1.bf16.msra.mxu0 0
        %667 = vmatprep.subr.bf16.mxu0 0
        %668 = vmatpush1.bf16.msra.mxu0 0
        %669 = vmatprep.subr.bf16.mxu0 0
        %670 = vmatpush1.bf16.msra.mxu0 0
        %671 = vmatprep.mubr.bf16.mxu0 0
        %672 = vmatmul.mubr.bf16.gmra.mrb[0].mxu0 %v383
        %v673 = vpop.f32.mrb[0].mxu0
        %v674 = vadd.f32 %v276, %v673
        %v675 = vpop.f32.mrb[0].mxu0
        %v676 = vadd.f32 %v280, %v675
        %v677 = vpop.f32.mrb[0].mxu0
        %v678 = vadd.f32 %v276, %v677
        %v679 = vpop.f32.mrb[0].mxu0
        %v680 = vadd.f32 %v280, %v679
        %681 = vmatprep.mubr.bf16.mxu0 0
        %682 = vmatmul.mubr.bf16.gmra.mrb[0].mxu0 %v386
        %v683 = vpop.f32.mrb[0].mxu0
        %v684 = vadd.f32 %v276, %v683
        %v685 = vpop.f32.mrb[0].mxu0
        %v686 = vadd.f32 %v280, %v685
        %v687 = vpop.f32.mrb[0].mxu0
        %v688 = vadd.f32 %v276, %v687
        %v689 = vpop.f32.mrb[0].mxu0
        %v690 = vadd.f32 %v280, %v689
        %691 = vmatprep.mubr.bf16.mxu0 0
        %692 = vmatmul.mubr.bf16.gmra.mrb[0].mxu0 %v389
        %v693 = vpop.f32.mrb[0].mxu0
        %v694 = vadd.f32 %v276, %v693
        %v695 = vpop.f32.mrb[0].mxu0
        %v696 = vadd.f32 %v280, %v695
        %v697 = vpop.f32.mrb[0].mxu0
        %v698 = vadd.f32 %v276, %v697
        %v699 = vpop.f32.mrb[0].mxu0
        %v700 = vadd.f32 %v280, %v699
        %701 = vmatprep.mubr.bf16.mxu0 0
        %702 = vmatmul.mubr.bf16.gmra.mrb[0].mxu0 %v392
        %v703 = vpop.f32.mrb[0].mxu0
        %v704 = vadd.f32 %v276, %v703
        %v705 = vpop.f32.mrb[0].mxu0
        %v706 = vadd.f32 %v280, %v705
        %v707 = vpop.f32.mrb[0].mxu0
        %v708 = vadd.f32 %v276, %v707
        %v709 = vpop.f32.mrb[0].mxu0
        %v710 = vadd.f32 %v280, %v709
        %711 = vmatprep.mubr.bf16.mxu0 0
        %712 = vmatmul.mubr.bf16.gmra.mrb[0].mxu0 %v395
        %v713 = vpop.f32.mrb[0].mxu0
        %v714 = vadd.f32 %v276, %v713
        %v715 = vpop.f32.mrb[0].mxu0
        %v716 = vadd.f32 %v280, %v715
        %v717 = vpop.f32.mrb[0].mxu0
        %v718 = vadd.f32 %v276, %v717
        %v719 = vpop.f32.mrb[0].mxu0
        %v720 = vadd.f32 %v280, %v719
        %721 = vmatprep.mubr.bf16.mxu0 0
        %722 = vmatmul.mubr.bf16.gmra.mrb[0].mxu0 %v398
        %v723 = vpop.f32.mrb[0].mxu0
        %v724 = vadd.f32 %v276, %v723
        %v725 = vpop.f32.mrb[0].mxu0
        %v726 = vadd.f32 %v280, %v725
        %v727 = vpop.f32.mrb[0].mxu0
        %v728 = vadd.f32 %v276, %v727
        %v729 = vpop.f32.mrb[0].mxu0
        %v730 = vadd.f32 %v280, %v729
        %731 = vmatprep.mubr.bf16.mxu0 0
        %732 = vmatmul.mubr.bf16.gmra.mrb[0].mxu0 %v401
        %v733 = vpop.f32.mrb[0].mxu0
        %v734 = vadd.f32 %v276, %v733
        %v735 = vpop.f32.mrb[0].mxu0
        %v736 = vadd.f32 %v280, %v735
        %v737 = vpop.f32.mrb[0].mxu0
        %v738 = vadd.f32 %v276, %v737
        %v739 = vpop.f32.mrb[0].mxu0
        %v740 = vadd.f32 %v280, %v739
        %741 = vmatprep.mubr.bf16.mxu0 0
        %742 = vmatmul.mubr.bf16.gmra.mrb[0].mxu0 %v404
        %v743 = vpop.f32.mrb[0].mxu0
        %v744 = vadd.f32 %v276, %v743
        %v745 = vpop.f32.mrb[0].mxu0
        %v746 = vadd.f32 %v280, %v745
        %v747 = vpop.f32.mrb[0].mxu0
        %v748 = vadd.f32 %v276, %v747
        %v749 = vpop.f32.mrb[0].mxu0
        %v750 = vadd.f32 %v280, %v749
        %751 = vmatprep.mubr.bf16.mxu0 0
        %752 = vmatmul.mubr.bf16.gmra.mrb[0].mxu0 %v407
        %v753 = vpop.f32.mrb[0].mxu0
        %v754 = vadd.f32 %v276, %v753
        %v755 = vpop.f32.mrb[0].mxu0
        %v756 = vadd.f32 %v280, %v755
        %v757 = vpop.f32.mrb[0].mxu0
        %v758 = vadd.f32 %v276, %v757
        %v759 = vpop.f32.mrb[0].mxu0
        %v760 = vadd.f32 %v280, %v759
        %761 = vmatprep.mubr.bf16.mxu0 0
        %762 = vmatmul.mubr.bf16.gmra.mrb[0].mxu0 %v410
        %v763 = vpop.f32.mrb[0].mxu0
        %v764 = vadd.f32 %v276, %v763
        %v765 = vpop.f32.mrb[0].mxu0
        %v766 = vadd.f32 %v280, %v765
        %v767 = vpop.f32.mrb[0].mxu0
        %v768 = vadd.f32 %v276, %v767
        %v769 = vpop.f32.mrb[0].mxu0
        %v770 = vadd.f32 %v280, %v769
        %771 = vmatprep.mubr.bf16.mxu0 0
        %772 = vmatmul.mubr.bf16.gmra.mrb[0].mxu0 %v413
        %v773 = vpop.f32.mrb[0].mxu0
        %v774 = vadd.f32 %v276, %v773
        %v775 = vpop.f32.mrb[0].mxu0
        %v776 = vadd.f32 %v280, %v775
        %v777 = vpop.f32.mrb[0].mxu0
        %v778 = vadd.f32 %v276, %v777
        %v779 = vpop.f32.mrb[0].mxu0
        %v780 = vadd.f32 %v280, %v779
        %781 = vmatprep.mubr.bf16.mxu0 0
        %782 = vmatmul.mubr.bf16.gmra.mrb[0].mxu0 %v416
        %v783 = vpop.f32.mrb[0].mxu0
        %v784 = vadd.f32 %v276, %v783
        %v785 = vpop.f32.mrb[0].mxu0
        %v786 = vadd.f32 %v280, %v785
        %v787 = vpop.f32.mrb[0].mxu0
        %v788 = vadd.f32 %v276, %v787
        %v789 = vpop.f32.mrb[0].mxu0
        %v790 = vadd.f32 %v280, %v789
        %791 = vmatprep.mubr.bf16.mxu0 0
        %792 = vmatmul.mubr.bf16.gmra.mrb[0].mxu0 %v419
        %v793 = vpop.f32.mrb[0].mxu0
        %v794 = vadd.f32 %v276, %v793
        %v795 = vpop.f32.mrb[0].mxu0
        %v796 = vadd.f32 %v280, %v795
        %v797 = vpop.f32.mrb[0].mxu0
        %v798 = vadd.f32 %v276, %v797
        %v799 = vpop.f32.mrb[0].mxu0
        %v800 = vadd.f32 %v280, %v799
        %801 = vmatprep.mubr.bf16.mxu0 0
        %802 = vmatmul.mubr.bf16.gmra.mrb[0].mxu0 %v422
        %v803 = vpop.f32.mrb[0].mxu0
        %v804 = vadd.f32 %v276, %v803
        %v805 = vpop.f32.mrb[0].mxu0
        %v806 = vadd.f32 %v280, %v805
        %v807 = vpop.f32.mrb[0].mxu0
        %v808 = vadd.f32 %v276, %v807
        %v809 = vpop.f32.mrb[0].mxu0
        %v810 = vadd.f32 %v280, %v809
        %811 = vmatprep.mubr.bf16.mxu0 0
        %812 = vmatmul.mubr.bf16.gmra.mrb[0].mxu0 %v425
        %v813 = vpop.f32.mrb[0].mxu0
        %v814 = vadd.f32 %v276, %v813
        %v815 = vpop.f32.mrb[0].mxu0
        %v816 = vadd.f32 %v280, %v815
        %v817 = vpop.f32.mrb[0].mxu0
        %v818 = vadd.f32 %v276, %v817
        %v819 = vpop.f32.mrb[0].mxu0
        %v820 = vadd.f32 %v280, %v819
        %821 = vmatprep.mubr.bf16.mxu0 0
        %822 = vmatmul.mubr.bf16.gmra.mrb[0].mxu0 %v428
        %v823 = vpop.f32.mrb[0].mxu0
        %v824 = vadd.f32 %v276, %v823
        %v825 = vpop.f32.mrb[0].mxu0
        %v826 = vadd.f32 %v280, %v825
        %v827 = vpop.f32.mrb[0].mxu0
        %v828 = vadd.f32 %v276, %v827
        %v829 = vpop.f32.mrb[0].mxu0
        %v830 = vadd.f32 %v280, %v829
        %831 = vdwg.mxu0
        %v832 = vmul.f32 %v481, 0.01
        %v833 = vmul.f32 %v483, 0.01
        %v834 = vmul.f32 %v674, 0.01
        %v835 = vmul.f32 %v676, 0.01
        %v836 = vmul.f32 %v485, 0.01
        %v837 = vmul.f32 %v487, 0.01
        %v838 = vmul.f32 %v678, 0.01
        %v839 = vmul.f32 %v680, 0.01
        %v840 = vmul.f32 %v491, 0.01
        %v841 = vmul.f32 %v493, 0.01
        %v842 = vmul.f32 %v684, 0.01
        %v843 = vmul.f32 %v686, 0.01
        %v844 = vmul.f32 %v495, 0.01
        %v845 = vmul.f32 %v497, 0.01
        %v846 = vmul.f32 %v688, 0.01
        %v847 = vmul.f32 %v690, 0.01
        %v848 = vmul.f32 %v501, 0.01
        %v849 = vmul.f32 %v503, 0.01
        %v850 = vmul.f32 %v694, 0.01
        %v851 = vmul.f32 %v696, 0.01
        %v852 = vmul.f32 %v505, 0.01
        %v853 = vmul.f32 %v507, 0.01
        %v854 = vmul.f32 %v698, 0.01
        %v855 = vmul.f32 %v700, 0.01
        %v856 = vmul.f32 %v511, 0.01
        %v857 = vmul.f32 %v513, 0.01
        %v858 = vmul.f32 %v704, 0.01
        %v859 = vmul.f32 %v706, 0.01
        %v860 = vmul.f32 %v515, 0.01
        %v861 = vmul.f32 %v517, 0.01
        %v862 = vmul.f32 %v708, 0.01
        %v863 = vmul.f32 %v710, 0.01
        %v864 = vmul.f32 %v521, 0.01
        %v865 = vmul.f32 %v523, 0.01
        %v866 = vmul.f32 %v714, 0.01
        %v867 = vmul.f32 %v716, 0.01
        %v868 = vmul.f32 %v525, 0.01
        %v869 = vmul.f32 %v527, 0.01
        %v870 = vmul.f32 %v718, 0.01
        %v871 = vmul.f32 %v720, 0.01
        %v872 = vmul.f32 %v531, 0.01
        %v873 = vmul.f32 %v533, 0.01
        %v874 = vmul.f32 %v724, 0.01
        %v875 = vmul.f32 %v726, 0.01
        %v876 = vmul.f32 %v535, 0.01
        %v877 = vmul.f32 %v537, 0.01
        %v878 = vmul.f32 %v728, 0.01
        %v879 = vmul.f32 %v730, 0.01
        %v880 = vmul.f32 %v541, 0.01
        %v881 = vmul.f32 %v543, 0.01
        %v882 = vmul.f32 %v734, 0.01
        %v883 = vmul.f32 %v736, 0.01
        %v884 = vmul.f32 %v545, 0.01
        %v885 = vmul.f32 %v547, 0.01
        %v886 = vmul.f32 %v738, 0.01
        %v887 = vmul.f32 %v740, 0.01
        %v888 = vmul.f32 %v551, 0.01
        %v889 = vmul.f32 %v553, 0.01
        %v890 = vmul.f32 %v744, 0.01
        %v891 = vmul.f32 %v746, 0.01
        %v892 = vmul.f32 %v555, 0.01
        %v893 = vmul.f32 %v557, 0.01
        %v894 = vmul.f32 %v748, 0.01
        %v895 = vmul.f32 %v750, 0.01
        %v896 = vmul.f32 %v561, 0.01
        %v897 = vmul.f32 %v563, 0.01
        %v898 = vmul.f32 %v754, 0.01
        %v899 = vmul.f32 %v756, 0.01
        %v900 = vmul.f32 %v565, 0.01
        %v901 = vmul.f32 %v567, 0.01
        %v902 = vmul.f32 %v758, 0.01
        %v903 = vmul.f32 %v760, 0.01
        %v904 = vmul.f32 %v571, 0.01
        %v905 = vmul.f32 %v573, 0.01
        %v906 = vmul.f32 %v764, 0.01
        %v907 = vmul.f32 %v766, 0.01
        %v908 = vmul.f32 %v575, 0.01
        %v909 = vmul.f32 %v577, 0.01
        %v910 = vmul.f32 %v768, 0.01
        %v911 = vmul.f32 %v770, 0.01
        %v912 = vmul.f32 %v581, 0.01
        %v913 = vmul.f32 %v583, 0.01
        %v914 = vmul.f32 %v774, 0.01
        %v915 = vmul.f32 %v776, 0.01
        %v916 = vmul.f32 %v585, 0.01
        %v917 = vmul.f32 %v587, 0.01
        %v918 = vmul.f32 %v778, 0.01
        %v919 = vmul.f32 %v780, 0.01
        %v920 = vmul.f32 %v591, 0.01
        %v921 = vmul.f32 %v593, 0.01
        %v922 = vmul.f32 %v784, 0.01
        %v923 = vmul.f32 %v786, 0.01
        %v924 = vmul.f32 %v595, 0.01
        %v925 = vmul.f32 %v597, 0.01
        %v926 = vmul.f32 %v788, 0.01
        %v927 = vmul.f32 %v790, 0.01
        %v928 = vmul.f32 %v601, 0.01
        %v929 = vmul.f32 %v603, 0.01
        %v930 = vmul.f32 %v794, 0.01
        %v931 = vmul.f32 %v796, 0.01
        %v932 = vmul.f32 %v605, 0.01
        %v933 = vmul.f32 %v607, 0.01
        %v934 = vmul.f32 %v798, 0.01
        %v935 = vmul.f32 %v800, 0.01
        %v936 = vmul.f32 %v611, 0.01
        %v937 = vmul.f32 %v613, 0.01
        %v938 = vmul.f32 %v804, 0.01
        %v939 = vmul.f32 %v806, 0.01
        %v940 = vmul.f32 %v615, 0.01
        %v941 = vmul.f32 %v617, 0.01
        %v942 = vmul.f32 %v808, 0.01
        %v943 = vmul.f32 %v810, 0.01
        %v944 = vmul.f32 %v621, 0.01
        %v945 = vmul.f32 %v623, 0.01
        %v946 = vmul.f32 %v814, 0.01
        %v947 = vmul.f32 %v816, 0.01
        %v948 = vmul.f32 %v625, 0.01
        %v949 = vmul.f32 %v627, 0.01
        %v950 = vmul.f32 %v818, 0.01
        %v951 = vmul.f32 %v820, 0.01
        %v952 = vmul.f32 %v631, 0.01
        %v953 = vmul.f32 %v633, 0.01
        %v954 = vmul.f32 %v824, 0.01
        %v955 = vmul.f32 %v826, 0.01
        %v956 = vmul.f32 %v635, 0.01
        %v957 = vmul.f32 %v637, 0.01
        %v958 = vmul.f32 %v828, 0.01
        %v959 = vmul.f32 %v830, 0.01
        %v960 = vmax.f32 %v481, %v832
        %v961 = vmax.f32 %v483, %v833
        %v962 = vmax.f32 %v674, %v834
        %v963 = vmax.f32 %v676, %v835
        %v964 = vmax.f32 %v485, %v836
        %v965 = vmax.f32 %v487, %v837
        %v966 = vmax.f32 %v678, %v838
        %v967 = vmax.f32 %v680, %v839
        %v968 = vmax.f32 %v491, %v840
        %v969 = vmax.f32 %v493, %v841
        %v970 = vmax.f32 %v684, %v842
        %v971 = vmax.f32 %v686, %v843
        %v972 = vmax.f32 %v495, %v844
        %v973 = vmax.f32 %v497, %v845
        %v974 = vmax.f32 %v688, %v846
        %v975 = vmax.f32 %v690, %v847
        %v976 = vmax.f32 %v501, %v848
        %v977 = vmax.f32 %v503, %v849
        %v978 = vmax.f32 %v694, %v850
        %v979 = vmax.f32 %v696, %v851
        %v980 = vmax.f32 %v505, %v852
        %v981 = vmax.f32 %v507, %v853
        %v982 = vmax.f32 %v698, %v854
        %v983 = vmax.f32 %v700, %v855
        %v984 = vmax.f32 %v511, %v856
        %v985 = vmax.f32 %v513, %v857
        %v986 = vmax.f32 %v704, %v858
        %v987 = vmax.f32 %v706, %v859
        %v988 = vmax.f32 %v515, %v860
        %v989 = vmax.f32 %v517, %v861
        %v990 = vmax.f32 %v708, %v862
        %v991 = vmax.f32 %v710, %v863
        %v992 = vmax.f32 %v521, %v864
        %v993 = vmax.f32 %v523, %v865
        %v994 = vmax.f32 %v714, %v866
        %v995 = vmax.f32 %v716, %v867
        %v996 = vmax.f32 %v525, %v868
        %v997 = vmax.f32 %v527, %v869
        %v998 = vmax.f32 %v718, %v870
        %v999 = vmax.f32 %v720, %v871
        %v1000 = vmax.f32 %v531, %v872
        %v1001 = vmax.f32 %v533, %v873
        %v1002 = vmax.f32 %v724, %v874
        %v1003 = vmax.f32 %v726, %v875
        %v1004 = vmax.f32 %v535, %v876
        %v1005 = vmax.f32 %v537, %v877
        %v1006 = vmax.f32 %v728, %v878
        %v1007 = vmax.f32 %v730, %v879
        %v1008 = vmax.f32 %v541, %v880
        %v1009 = vmax.f32 %v543, %v881
        %v1010 = vmax.f32 %v734, %v882
        %v1011 = vmax.f32 %v736, %v883
        %v1012 = vmax.f32 %v545, %v884
        %v1013 = vmax.f32 %v547, %v885
        %v1014 = vmax.f32 %v738, %v886
        %v1015 = vmax.f32 %v740, %v887
        %v1016 = vmax.f32 %v551, %v888
        %v1017 = vmax.f32 %v553, %v889
        %v1018 = vmax.f32 %v744, %v890
        %v1019 = vmax.f32 %v746, %v891
        %v1020 = vmax.f32 %v555, %v892
        %v1021 = vmax.f32 %v557, %v893
        %v1022 = vmax.f32 %v748, %v894
        %v1023 = vmax.f32 %v750, %v895
        %v1024 = vmax.f32 %v561, %v896
        %v1025 = vmax.f32 %v563, %v897
        %v1026 = vmax.f32 %v754, %v898
        %v1027 = vmax.f32 %v756, %v899
        %v1028 = vmax.f32 %v565, %v900
        %v1029 = vmax.f32 %v567, %v901
        %v1030 = vmax.f32 %v758, %v902
        %v1031 = vmax.f32 %v760, %v903
        %v1032 = vmax.f32 %v571, %v904
        %v1033 = vmax.f32 %v573, %v905
        %v1034 = vmax.f32 %v764, %v906
        %v1035 = vmax.f32 %v766, %v907
        %v1036 = vmax.f32 %v575, %v908
        %v1037 = vmax.f32 %v577, %v909
        %v1038 = vmax.f32 %v768, %v910
        %v1039 = vmax.f32 %v770, %v911
        %v1040 = vmax.f32 %v581, %v912
        %v1041 = vmax.f32 %v583, %v913
        %v1042 = vmax.f32 %v774, %v914
        %v1043 = vmax.f32 %v776, %v915
        %v1044 = vmax.f32 %v585, %v916
        %v1045 = vmax.f32 %v587, %v917
        %v1046 = vmax.f32 %v778, %v918
        %v1047 = vmax.f32 %v780, %v919
        %v1048 = vmax.f32 %v591, %v920
        %v1049 = vmax.f32 %v593, %v921
        %v1050 = vmax.f32 %v784, %v922
        %v1051 = vmax.f32 %v786, %v923
        %v1052 = vmax.f32 %v595, %v924
        %v1053 = vmax.f32 %v597, %v925
        %v1054 = vmax.f32 %v788, %v926
        %v1055 = vmax.f32 %v790, %v927
        %v1056 = vmax.f32 %v601, %v928
        %v1057 = vmax.f32 %v603, %v929
        %v1058 = vmax.f32 %v794, %v930
        %v1059 = vmax.f32 %v796, %v931
        %v1060 = vmax.f32 %v605, %v932
        %v1061 = vmax.f32 %v607, %v933
        %v1062 = vmax.f32 %v798, %v934
        %v1063 = vmax.f32 %v800, %v935
        %v1064 = vmax.f32 %v611, %v936
        %v1065 = vmax.f32 %v613, %v937
        %v1066 = vmax.f32 %v804, %v938
        %v1067 = vmax.f32 %v806, %v939
        %v1068 = vmax.f32 %v615, %v940
        %v1069 = vmax.f32 %v617, %v941
        %v1070 = vmax.f32 %v808, %v942
        %v1071 = vmax.f32 %v810, %v943
        %v1072 = vmax.f32 %v621, %v944
        %v1073 = vmax.f32 %v623, %v945
        %v1074 = vmax.f32 %v814, %v946
        %v1075 = vmax.f32 %v816, %v947
        %v1076 = vmax.f32 %v625, %v948
        %v1077 = vmax.f32 %v627, %v949
        %v1078 = vmax.f32 %v818, %v950
        %v1079 = vmax.f32 %v820, %v951
        %v1080 = vmax.f32 %v631, %v952
        %v1081 = vmax.f32 %v633, %v953
        %v1082 = vmax.f32 %v824, %v954
        %v1083 = vmax.f32 %v826, %v955
        %v1084 = vmax.f32 %v635, %v956
        %v1085 = vmax.f32 %v637, %v957
        %v1086 = vmax.f32 %v828, %v958
        %v1087 = vmax.f32 %v830, %v959
        %v1088 = vpack.c.bf16 %v964, %v960
        %v1089 = vpack.c.bf16 %v965, %v961
        %v1090 = vpack.c.bf16 %v966, %v962
        %v1091 = vpack.c.bf16 %v967, %v963
        %v1092 = vpack.c.bf16 %v972, %v968
        %v1093 = vpack.c.bf16 %v973, %v969
        %v1094 = vpack.c.bf16 %v974, %v970
        %v1095 = vpack.c.bf16 %v975, %v971
        %v1096 = vpack.c.bf16 %v980, %v976
        %v1097 = vpack.c.bf16 %v981, %v977
        %v1098 = vpack.c.bf16 %v982, %v978
        %v1099 = vpack.c.bf16 %v983, %v979
        %v1100 = vpack.c.bf16 %v988, %v984
        %v1101 = vpack.c.bf16 %v989, %v985
        %v1102 = vpack.c.bf16 %v990, %v986
        %v1103 = vpack.c.bf16 %v991, %v987
        %v1104 = vpack.c.bf16 %v996, %v992
        %v1105 = vpack.c.bf16 %v997, %v993
        %v1106 = vpack.c.bf16 %v998, %v994
        %v1107 = vpack.c.bf16 %v999, %v995
        %v1108 = vpack.c.bf16 %v1004, %v1000
        %v1109 = vpack.c.bf16 %v1005, %v1001
        %v1110 = vpack.c.bf16 %v1006, %v1002
        %v1111 = vpack.c.bf16 %v1007, %v1003
        %v1112 = vpack.c.bf16 %v1012, %v1008
        %v1113 = vpack.c.bf16 %v1013, %v1009
        %v1114 = vpack.c.bf16 %v1014, %v1010
        %v1115 = vpack.c.bf16 %v1015, %v1011
        %v1116 = vpack.c.bf16 %v1020, %v1016
        %v1117 = vpack.c.bf16 %v1021, %v1017
        %v1118 = vpack.c.bf16 %v1022, %v1018
        %v1119 = vpack.c.bf16 %v1023, %v1019
        %v1120 = vpack.c.bf16 %v1028, %v1024
        %v1121 = vpack.c.bf16 %v1029, %v1025
        %v1122 = vpack.c.bf16 %v1030, %v1026
        %v1123 = vpack.c.bf16 %v1031, %v1027
        %v1124 = vpack.c.bf16 %v1036, %v1032
        %v1125 = vpack.c.bf16 %v1037, %v1033
        %v1126 = vpack.c.bf16 %v1038, %v1034
        %v1127 = vpack.c.bf16 %v1039, %v1035
        %v1128 = vpack.c.bf16 %v1044, %v1040
        %v1129 = vpack.c.bf16 %v1045, %v1041
        %v1130 = vpack.c.bf16 %v1046, %v1042
        %v1131 = vpack.c.bf16 %v1047, %v1043
        %v1132 = vpack.c.bf16 %v1052, %v1048
        %v1133 = vpack.c.bf16 %v1053, %v1049
        %v1134 = vpack.c.bf16 %v1054, %v1050
        %v1135 = vpack.c.bf16 %v1055, %v1051
        %v1136 = vpack.c.bf16 %v1060, %v1056
        %v1137 = vpack.c.bf16 %v1061, %v1057
        %v1138 = vpack.c.bf16 %v1062, %v1058
        %v1139 = vpack.c.bf16 %v1063, %v1059
        %v1140 = vpack.c.bf16 %v1068, %v1064
        %v1141 = vpack.c.bf16 %v1069, %v1065
        %v1142 = vpack.c.bf16 %v1070, %v1066
        %v1143 = vpack.c.bf16 %v1071, %v1067
        %v1144 = vpack.c.bf16 %v1076, %v1072
        %v1145 = vpack.c.bf16 %v1077, %v1073
        %v1146 = vpack.c.bf16 %v1078, %v1074
        %v1147 = vpack.c.bf16 %v1079, %v1075
        %v1148 = vpack.c.bf16 %v1084, %v1080
        %v1149 = vpack.c.bf16 %v1085, %v1081
        %v1150 = vpack.c.bf16 %v1086, %v1082
        %v1151 = vpack.c.bf16 %v1087, %v1083
        %v1152 = vld [vmem:[%s3] sm:$0xff]
        %v1153 = vld [vmem:[%s3 + $0x8] sm:$0xff]
        %v1154 = vld [vmem:[%s3 + $0x10] sm:$0xff]
        %v1155 = vld [vmem:[%s3 + $0x18] sm:$0xff]
        %v1156 = vld [vmem:[%s3 + $0x20] sm:$0xff]
        %v1157 = vld [vmem:[%s3 + $0x28] sm:$0xff]
        %v1158 = vld [vmem:[%s3 + $0x30] sm:$0xff]
        %v1159 = vld [vmem:[%s3 + $0x38] sm:$0xff]
        %v1160 = vld [vmem:[%s3 + $0x40] sm:$0xff]
        %v1161 = vld [vmem:[%s3 + $0x48] sm:$0xff]
        %v1162 = vld [vmem:[%s3 + $0x50] sm:$0xff]
        %v1163 = vld [vmem:[%s3 + $0x58] sm:$0xff]
        %v1164 = vld [vmem:[%s3 + $0x60] sm:$0xff]
        %v1165 = vld [vmem:[%s3 + $0x68] sm:$0xff]
        %v1166 = vld [vmem:[%s3 + $0x70] sm:$0xff]
        %v1167 = vld [vmem:[%s3 + $0x78] sm:$0xff]
        %v1168 = vld [vmem:[%s3 + $0x80] sm:$0xff]
        %v1169 = vld [vmem:[%s3 + $0x88] sm:$0xff]
        %v1170 = vld [vmem:[%s3 + $0x90] sm:$0xff]
        %v1171 = vld [vmem:[%s3 + $0x98] sm:$0xff]
        %v1172 = vld [vmem:[%s3 + $0xa0] sm:$0xff]
        %v1173 = vld [vmem:[%s3 + $0xa8] sm:$0xff]
        %v1174 = vld [vmem:[%s3 + $0xb0] sm:$0xff]
        %v1175 = vld [vmem:[%s3 + $0xb8] sm:$0xff]
        %v1176 = vld [vmem:[%s3 + $0xc0] sm:$0xff]
        %v1177 = vld [vmem:[%s3 + $0xc8] sm:$0xff]
        %v1178 = vld [vmem:[%s3 + $0xd0] sm:$0xff]
        %v1179 = vld [vmem:[%s3 + $0xd8] sm:$0xff]
        %v1180 = vld [vmem:[%s3 + $0xe0] sm:$0xff]
        %v1181 = vld [vmem:[%s3 + $0xe8] sm:$0xff]
        %v1182 = vld [vmem:[%s3 + $0xf0] sm:$0xff]
        %v1183 = vld [vmem:[%s3 + $0xf8] sm:$0xff]
        %v1184 = vld [vmem:[%s3 + $0x100] sm:$0xff]
        %v1185 = vld [vmem:[%s3 + $0x108] sm:$0xff]
        %v1186 = vld [vmem:[%s3 + $0x110] sm:$0xff]
        %v1187 = vld [vmem:[%s3 + $0x118] sm:$0xff]
        %v1188 = vld [vmem:[%s3 + $0x120] sm:$0xff]
        %v1189 = vld [vmem:[%s3 + $0x128] sm:$0xff]
        %v1190 = vld [vmem:[%s3 + $0x130] sm:$0xff]
        %v1191 = vld [vmem:[%s3 + $0x138] sm:$0xff]
        %v1192 = vld [vmem:[%s3 + $0x140] sm:$0xff]
        %v1193 = vld [vmem:[%s3 + $0x148] sm:$0xff]
        %v1194 = vld [vmem:[%s3 + $0x150] sm:$0xff]
        %v1195 = vld [vmem:[%s3 + $0x158] sm:$0xff]
        %v1196 = vld [vmem:[%s3 + $0x160] sm:$0xff]
        %v1197 = vld [vmem:[%s3 + $0x168] sm:$0xff]
        %v1198 = vld [vmem:[%s3 + $0x170] sm:$0xff]
        %v1199 = vld [vmem:[%s3 + $0x178] sm:$0xff]
        %v1200 = vld [vmem:[%s3 + $0x180] sm:$0xff]
        %v1201 = vld [vmem:[%s3 + $0x188] sm:$0xff]
        %v1202 = vld [vmem:[%s3 + $0x190] sm:$0xff]
        %v1203 = vld [vmem:[%s3 + $0x198] sm:$0xff]
        %v1204 = vld [vmem:[%s3 + $0x1a0] sm:$0xff]
        %v1205 = vld [vmem:[%s3 + $0x1a8] sm:$0xff]
        %v1206 = vld [vmem:[%s3 + $0x1b0] sm:$0xff]
        %v1207 = vld [vmem:[%s3 + $0x1b8] sm:$0xff]
        %v1208 = vld [vmem:[%s3 + $0x1c0] sm:$0xff]
        %v1209 = vld [vmem:[%s3 + $0x1c8] sm:$0xff]
        %v1210 = vld [vmem:[%s3 + $0x1d0] sm:$0xff]
        %v1211 = vld [vmem:[%s3 + $0x1d8] sm:$0xff]
        %v1212 = vld [vmem:[%s3 + $0x1e0] sm:$0xff]
        %v1213 = vld [vmem:[%s3 + $0x1e8] sm:$0xff]
        %v1214 = vld [vmem:[%s3 + $0x1f0] sm:$0xff]
        %v1215 = vld [vmem:[%s3 + $0x1f8] sm:$0xff]
        %v1216 = vld [vmem:[%s4] sm:$0x3]
        %v1218 = vlaneseq
        %v1219 = vshrl.u32 %v1218, 7
        %v1220 = vsub.s32 0, %v1219
        %v1221 = vrot.slane %v1216, %v1220
        %v1222 = vlaneseq
        %v1223 = vshrl.u32 %v1222, 7
        %v1224 = vsub.s32 1, %v1223
        %v1225 = vrot.slane %v1216, %v1224
        %v1292 = vunpack.c.l.b16 %v1152
        %v1293 = vunpack.c.h.b16 %v1152
        %v1294 = vunpack.c.l.b16 %v1153
        %v1295 = vunpack.c.h.b16 %v1153
        %v1296 = vunpack.c.l.b16 %v1154
        %v1297 = vunpack.c.h.b16 %v1154
        %v1298 = vunpack.c.l.b16 %v1155
        %v1299 = vunpack.c.h.b16 %v1155
        %v1300 = vunpack.c.l.b16 %v1156
        %v1301 = vunpack.c.h.b16 %v1156
        %v1302 = vunpack.c.l.b16 %v1157
        %v1303 = vunpack.c.h.b16 %v1157
        %v1304 = vunpack.c.l.b16 %v1158
        %v1305 = vunpack.c.h.b16 %v1158
        %v1306 = vunpack.c.l.b16 %v1159
        %v1307 = vunpack.c.h.b16 %v1159
        %v1308 = vunpack.c.l.b16 %v1160
        %v1309 = vunpack.c.h.b16 %v1160
        %v1310 = vunpack.c.l.b16 %v1161
        %v1311 = vunpack.c.h.b16 %v1161
        %v1312 = vunpack.c.l.b16 %v1162
        %v1313 = vunpack.c.h.b16 %v1162
        %v1314 = vunpack.c.l.b16 %v1163
        %v1315 = vunpack.c.h.b16 %v1163
        %v1316 = vunpack.c.l.b16 %v1164
        %v1317 = vunpack.c.h.b16 %v1164
        %v1318 = vunpack.c.l.b16 %v1165
        %v1319 = vunpack.c.h.b16 %v1165
        %v1320 = vunpack.c.l.b16 %v1166
        %v1321 = vunpack.c.h.b16 %v1166
        %v1322 = vunpack.c.l.b16 %v1167
        %v1323 = vunpack.c.h.b16 %v1167
        %v1324 = vunpack.c.l.b16 %v1168
        %v1325 = vunpack.c.h.b16 %v1168
        %v1326 = vunpack.c.l.b16 %v1169
        %v1327 = vunpack.c.h.b16 %v1169
        %v1328 = vunpack.c.l.b16 %v1170
        %v1329 = vunpack.c.h.b16 %v1170
        %v1330 = vunpack.c.l.b16 %v1171
        %v1331 = vunpack.c.h.b16 %v1171
        %v1332 = vunpack.c.l.b16 %v1172
        %v1333 = vunpack.c.h.b16 %v1172
        %v1334 = vunpack.c.l.b16 %v1173
        %v1335 = vunpack.c.h.b16 %v1173
        %v1336 = vunpack.c.l.b16 %v1174
        %v1337 = vunpack.c.h.b16 %v1174
        %v1338 = vunpack.c.l.b16 %v1175
        %v1339 = vunpack.c.h.b16 %v1175
        %v1340 = vunpack.c.l.b16 %v1176
        %v1341 = vunpack.c.h.b16 %v1176
        %v1342 = vunpack.c.l.b16 %v1177
        %v1343 = vunpack.c.h.b16 %v1177
        %v1344 = vunpack.c.l.b16 %v1178
        %v1345 = vunpack.c.h.b16 %v1178
        %v1346 = vunpack.c.l.b16 %v1179
        %v1347 = vunpack.c.h.b16 %v1179
        %v1348 = vunpack.c.l.b16 %v1180
        %v1349 = vunpack.c.h.b16 %v1180
        %v1350 = vunpack.c.l.b16 %v1181
        %v1351 = vunpack.c.h.b16 %v1181
        %v1352 = vunpack.c.l.b16 %v1182
        %v1353 = vunpack.c.h.b16 %v1182
        %v1354 = vunpack.c.l.b16 %v1183
        %v1355 = vunpack.c.h.b16 %v1183
        %v1356 = vunpack.c.l.b16 %v1184
        %v1357 = vunpack.c.h.b16 %v1184
        %v1358 = vunpack.c.l.b16 %v1185
        %v1359 = vunpack.c.h.b16 %v1185
        %v1360 = vunpack.c.l.b16 %v1186
        %v1361 = vunpack.c.h.b16 %v1186
        %v1362 = vunpack.c.l.b16 %v1187
        %v1363 = vunpack.c.h.b16 %v1187
        %v1364 = vunpack.c.l.b16 %v1188
        %v1365 = vunpack.c.h.b16 %v1188
        %v1366 = vunpack.c.l.b16 %v1189
        %v1367 = vunpack.c.h.b16 %v1189
        %v1368 = vunpack.c.l.b16 %v1190
        %v1369 = vunpack.c.h.b16 %v1190
        %v1370 = vunpack.c.l.b16 %v1191
        %v1371 = vunpack.c.h.b16 %v1191
        %v1372 = vunpack.c.l.b16 %v1192
        %v1373 = vunpack.c.h.b16 %v1192
        %v1374 = vunpack.c.l.b16 %v1193
        %v1375 = vunpack.c.h.b16 %v1193
        %v1376 = vunpack.c.l.b16 %v1194
        %v1377 = vunpack.c.h.b16 %v1194
        %v1378 = vunpack.c.l.b16 %v1195
        %v1379 = vunpack.c.h.b16 %v1195
        %v1380 = vunpack.c.l.b16 %v1196
        %v1381 = vunpack.c.h.b16 %v1196
        %v1382 = vunpack.c.l.b16 %v1197
        %v1383 = vunpack.c.h.b16 %v1197
        %v1384 = vunpack.c.l.b16 %v1198
        %v1385 = vunpack.c.h.b16 %v1198
        %v1386 = vunpack.c.l.b16 %v1199
        %v1387 = vunpack.c.h.b16 %v1199
        %v1388 = vunpack.c.l.b16 %v1200
        %v1389 = vunpack.c.h.b16 %v1200
        %v1390 = vunpack.c.l.b16 %v1201
        %v1391 = vunpack.c.h.b16 %v1201
        %v1392 = vunpack.c.l.b16 %v1202
        %v1393 = vunpack.c.h.b16 %v1202
        %v1394 = vunpack.c.l.b16 %v1203
        %v1395 = vunpack.c.h.b16 %v1203
        %v1396 = vunpack.c.l.b16 %v1204
        %v1397 = vunpack.c.h.b16 %v1204
        %v1398 = vunpack.c.l.b16 %v1205
        %v1399 = vunpack.c.h.b16 %v1205
        %v1400 = vunpack.c.l.b16 %v1206
        %v1401 = vunpack.c.h.b16 %v1206
        %v1402 = vunpack.c.l.b16 %v1207
        %v1403 = vunpack.c.h.b16 %v1207
        %v1404 = vunpack.c.l.b16 %v1208
        %v1405 = vunpack.c.h.b16 %v1208
        %v1406 = vunpack.c.l.b16 %v1209
        %v1407 = vunpack.c.h.b16 %v1209
        %v1408 = vunpack.c.l.b16 %v1210
        %v1409 = vunpack.c.h.b16 %v1210
        %v1410 = vunpack.c.l.b16 %v1211
        %v1411 = vunpack.c.h.b16 %v1211
        %v1412 = vunpack.c.l.b16 %v1212
        %v1413 = vunpack.c.h.b16 %v1212
        %v1414 = vunpack.c.l.b16 %v1213
        %v1415 = vunpack.c.h.b16 %v1213
        %v1416 = vunpack.c.l.b16 %v1214
        %v1417 = vunpack.c.h.b16 %v1214
        %v1418 = vunpack.c.l.b16 %v1215
        %v1419 = vunpack.c.h.b16 %v1215
        %v1420 = vpack.c.b16 %v1294, %v1292
        %v1421 = vpack.c.b16 %v1295, %v1293
        %v1422 = vpack.c.b16 %v1298, %v1296
        %v1423 = vpack.c.b16 %v1299, %v1297
        %v1424 = vpack.c.b16 %v1302, %v1300
        %v1425 = vpack.c.b16 %v1303, %v1301
        %v1426 = vpack.c.b16 %v1306, %v1304
        %v1427 = vpack.c.b16 %v1307, %v1305
        %v1428 = vpack.c.b16 %v1310, %v1308
        %v1429 = vpack.c.b16 %v1311, %v1309
        %v1430 = vpack.c.b16 %v1314, %v1312
        %v1431 = vpack.c.b16 %v1315, %v1313
        %v1432 = vpack.c.b16 %v1318, %v1316
        %v1433 = vpack.c.b16 %v1319, %v1317
        %v1434 = vpack.c.b16 %v1322, %v1320
        %v1435 = vpack.c.b16 %v1323, %v1321
        %v1436 = vpack.c.b16 %v1326, %v1324
        %v1437 = vpack.c.b16 %v1327, %v1325
        %v1438 = vpack.c.b16 %v1330, %v1328
        %v1439 = vpack.c.b16 %v1331, %v1329
        %v1440 = vpack.c.b16 %v1334, %v1332
        %v1441 = vpack.c.b16 %v1335, %v1333
        %v1442 = vpack.c.b16 %v1338, %v1336
        %v1443 = vpack.c.b16 %v1339, %v1337
        %v1444 = vpack.c.b16 %v1342, %v1340
        %v1445 = vpack.c.b16 %v1343, %v1341
        %v1446 = vpack.c.b16 %v1346, %v1344
        %v1447 = vpack.c.b16 %v1347, %v1345
        %v1448 = vpack.c.b16 %v1350, %v1348
        %v1449 = vpack.c.b16 %v1351, %v1349
        %v1450 = vpack.c.b16 %v1354, %v1352
        %v1451 = vpack.c.b16 %v1355, %v1353
        %v1452 = vpack.c.b16 %v1358, %v1356
        %v1453 = vpack.c.b16 %v1359, %v1357
        %v1454 = vpack.c.b16 %v1362, %v1360
        %v1455 = vpack.c.b16 %v1363, %v1361
        %v1456 = vpack.c.b16 %v1366, %v1364
        %v1457 = vpack.c.b16 %v1367, %v1365
        %v1458 = vpack.c.b16 %v1370, %v1368
        %v1459 = vpack.c.b16 %v1371, %v1369
        %v1460 = vpack.c.b16 %v1374, %v1372
        %v1461 = vpack.c.b16 %v1375, %v1373
        %v1462 = vpack.c.b16 %v1378, %v1376
        %v1463 = vpack.c.b16 %v1379, %v1377
        %v1464 = vpack.c.b16 %v1382, %v1380
        %v1465 = vpack.c.b16 %v1383, %v1381
        %v1466 = vpack.c.b16 %v1386, %v1384
        %v1467 = vpack.c.b16 %v1387, %v1385
        %v1468 = vpack.c.b16 %v1390, %v1388
        %v1469 = vpack.c.b16 %v1391, %v1389
        %v1470 = vpack.c.b16 %v1394, %v1392
        %v1471 = vpack.c.b16 %v1395, %v1393
        %v1472 = vpack.c.b16 %v1398, %v1396
        %v1473 = vpack.c.b16 %v1399, %v1397
        %v1474 = vpack.c.b16 %v1402, %v1400
        %v1475 = vpack.c.b16 %v1403, %v1401
        %v1476 = vpack.c.b16 %v1406, %v1404
        %v1477 = vpack.c.b16 %v1407, %v1405
        %v1478 = vpack.c.b16 %v1410, %v1408
        %v1479 = vpack.c.b16 %v1411, %v1409
        %v1480 = vpack.c.b16 %v1414, %v1412
        %v1481 = vpack.c.b16 %v1415, %v1413
        %v1482 = vpack.c.b16 %v1418, %v1416
        %v1483 = vpack.c.b16 %v1419, %v1417
        %1548 = vmatprep.subr.bf16.mxu0 %v1421
        %1549 = vmatpush1.bf16.msra.mxu0 %v1420
        %1550 = vmatprep.subr.bf16.mxu0 %v1423
        %1551 = vmatpush1.bf16.msra.mxu0 %v1422
        %1552 = vmatprep.subr.bf16.mxu0 %v1425
        %1553 = vmatpush1.bf16.msra.mxu0 %v1424
        %1554 = vmatprep.subr.bf16.mxu0 %v1427
        %1555 = vmatpush1.bf16.msra.mxu0 %v1426
        %1556 = vmatprep.subr.bf16.mxu0 %v1429
        %1557 = vmatpush1.bf16.msra.mxu0 %v1428
        %1558 = vmatprep.subr.bf16.mxu0 %v1431
        %1559 = vmatpush1.bf16.msra.mxu0 %v1430
        %1560 = vmatprep.subr.bf16.mxu0 %v1433
        %1561 = vmatpush1.bf16.msra.mxu0 %v1432
        %1562 = vmatprep.subr.bf16.mxu0 %v1435
        %1563 = vmatpush1.bf16.msra.mxu0 %v1434
        %1564 = vmatprep.subr.bf16.mxu0 %v1437
        %1565 = vmatpush1.bf16.msra.mxu0 %v1436
        %1566 = vmatprep.subr.bf16.mxu0 %v1439
        %1567 = vmatpush1.bf16.msra.mxu0 %v1438
        %1568 = vmatprep.subr.bf16.mxu0 %v1441
        %1569 = vmatpush1.bf16.msra.mxu0 %v1440
        %1570 = vmatprep.subr.bf16.mxu0 %v1443
        %1571 = vmatpush1.bf16.msra.mxu0 %v1442
        %1572 = vmatprep.subr.bf16.mxu0 %v1445
        %1573 = vmatpush1.bf16.msra.mxu0 %v1444
        %1574 = vmatprep.subr.bf16.mxu0 %v1447
        %1575 = vmatpush1.bf16.msra.mxu0 %v1446
        %1576 = vmatprep.subr.bf16.mxu0 %v1449
        %1577 = vmatpush1.bf16.msra.mxu0 %v1448
        %1578 = vmatprep.subr.bf16.mxu0 %v1451
        %1579 = vmatpush1.bf16.msra.mxu0 %v1450
        %1580 = vmatprep.mubr.bf16.mxu0 %v1089
        %1581 = vmatmul.mubr.bf16.gmra.mrb[0].mxu0 %v1088
        %v1582 = vpop.f32.mrb[0].mxu0
        %v1583 = vadd.f32 %v1221, %v1582
        %v1584 = vpop.f32.mrb[0].mxu0
        %v1585 = vadd.f32 %v1225, %v1584
        %v1586 = vpop.f32.mrb[0].mxu0
        %v1587 = vadd.f32 %v1221, %v1586
        %v1588 = vpop.f32.mrb[0].mxu0
        %v1589 = vadd.f32 %v1225, %v1588
        %1590 = vmatprep.mubr.bf16.mxu0 %v1093
        %1591 = vmatmul.mubr.bf16.gmra.mrb[0].mxu0 %v1092
        %v1592 = vpop.f32.mrb[0].mxu0
        %v1593 = vadd.f32 %v1221, %v1592
        %v1594 = vpop.f32.mrb[0].mxu0
        %v1595 = vadd.f32 %v1225, %v1594
        %v1596 = vpop.f32.mrb[0].mxu0
        %v1597 = vadd.f32 %v1221, %v1596
        %v1598 = vpop.f32.mrb[0].mxu0
        %v1599 = vadd.f32 %v1225, %v1598
        %1600 = vmatprep.mubr.bf16.mxu0 %v1097
        %1601 = vmatmul.mubr.bf16.gmra.mrb[0].mxu0 %v1096
        %v1602 = vpop.f32.mrb[0].mxu0
        %v1603 = vadd.f32 %v1221, %v1602
        %v1604 = vpop.f32.mrb[0].mxu0
        %v1605 = vadd.f32 %v1225, %v1604
        %v1606 = vpop.f32.mrb[0].mxu0
        %v1607 = vadd.f32 %v1221, %v1606
        %v1608 = vpop.f32.mrb[0].mxu0
        %v1609 = vadd.f32 %v1225, %v1608
        %1610 = vmatprep.mubr.bf16.mxu0 %v1101
        %1611 = vmatmul.mubr.bf16.gmra.mrb[0].mxu0 %v1100
        %v1612 = vpop.f32.mrb[0].mxu0
        %v1613 = vadd.f32 %v1221, %v1612
        %v1614 = vpop.f32.mrb[0].mxu0
        %v1615 = vadd.f32 %v1225, %v1614
        %v1616 = vpop.f32.mrb[0].mxu0
        %v1617 = vadd.f32 %v1221, %v1616
        %v1618 = vpop.f32.mrb[0].mxu0
        %v1619 = vadd.f32 %v1225, %v1618
        %1620 = vmatprep.mubr.bf16.mxu0 %v1105
        %1621 = vmatmul.mubr.bf16.gmra.mrb[0].mxu0 %v1104
        %v1622 = vpop.f32.mrb[0].mxu0
        %v1623 = vadd.f32 %v1221, %v1622
        %v1624 = vpop.f32.mrb[0].mxu0
        %v1625 = vadd.f32 %v1225, %v1624
        %v1626 = vpop.f32.mrb[0].mxu0
        %v1627 = vadd.f32 %v1221, %v1626
        %v1628 = vpop.f32.mrb[0].mxu0
        %v1629 = vadd.f32 %v1225, %v1628
        %1630 = vmatprep.mubr.bf16.mxu0 %v1109
        %1631 = vmatmul.mubr.bf16.gmra.mrb[0].mxu0 %v1108
        %v1632 = vpop.f32.mrb[0].mxu0
        %v1633 = vadd.f32 %v1221, %v1632
        %v1634 = vpop.f32.mrb[0].mxu0
        %v1635 = vadd.f32 %v1225, %v1634
        %v1636 = vpop.f32.mrb[0].mxu0
        %v1637 = vadd.f32 %v1221, %v1636
        %v1638 = vpop.f32.mrb[0].mxu0
        %v1639 = vadd.f32 %v1225, %v1638
        %1640 = vmatprep.mubr.bf16.mxu0 %v1113
        %1641 = vmatmul.mubr.bf16.gmra.mrb[0].mxu0 %v1112
        %v1642 = vpop.f32.mrb[0].mxu0
        %v1643 = vadd.f32 %v1221, %v1642
        %v1644 = vpop.f32.mrb[0].mxu0
        %v1645 = vadd.f32 %v1225, %v1644
        %v1646 = vpop.f32.mrb[0].mxu0
        %v1647 = vadd.f32 %v1221, %v1646
        %v1648 = vpop.f32.mrb[0].mxu0
        %v1649 = vadd.f32 %v1225, %v1648
        %1650 = vmatprep.mubr.bf16.mxu0 %v1117
        %1651 = vmatmul.mubr.bf16.gmra.mrb[0].mxu0 %v1116
        %v1652 = vpop.f32.mrb[0].mxu0
        %v1653 = vadd.f32 %v1221, %v1652
        %v1654 = vpop.f32.mrb[0].mxu0
        %v1655 = vadd.f32 %v1225, %v1654
        %v1656 = vpop.f32.mrb[0].mxu0
        %v1657 = vadd.f32 %v1221, %v1656
        %v1658 = vpop.f32.mrb[0].mxu0
        %v1659 = vadd.f32 %v1225, %v1658
        %1660 = vmatprep.mubr.bf16.mxu0 %v1121
        %1661 = vmatmul.mubr.bf16.gmra.mrb[0].mxu0 %v1120
        %v1662 = vpop.f32.mrb[0].mxu0
        %v1663 = vadd.f32 %v1221, %v1662
        %v1664 = vpop.f32.mrb[0].mxu0
        %v1665 = vadd.f32 %v1225, %v1664
        %v1666 = vpop.f32.mrb[0].mxu0
        %v1667 = vadd.f32 %v1221, %v1666
        %v1668 = vpop.f32.mrb[0].mxu0
        %v1669 = vadd.f32 %v1225, %v1668
        %1670 = vmatprep.mubr.bf16.mxu0 %v1125
        %1671 = vmatmul.mubr.bf16.gmra.mrb[0].mxu0 %v1124
        %v1672 = vpop.f32.mrb[0].mxu0
        %v1673 = vadd.f32 %v1221, %v1672
        %v1674 = vpop.f32.mrb[0].mxu0
        %v1675 = vadd.f32 %v1225, %v1674
        %v1676 = vpop.f32.mrb[0].mxu0
        %v1677 = vadd.f32 %v1221, %v1676
        %v1678 = vpop.f32.mrb[0].mxu0
        %v1679 = vadd.f32 %v1225, %v1678
        %1680 = vmatprep.mubr.bf16.mxu0 %v1129
        %1681 = vmatmul.mubr.bf16.gmra.mrb[0].mxu0 %v1128
        %v1682 = vpop.f32.mrb[0].mxu0
        %v1683 = vadd.f32 %v1221, %v1682
        %v1684 = vpop.f32.mrb[0].mxu0
        %v1685 = vadd.f32 %v1225, %v1684
        %v1686 = vpop.f32.mrb[0].mxu0
        %v1687 = vadd.f32 %v1221, %v1686
        %v1688 = vpop.f32.mrb[0].mxu0
        %v1689 = vadd.f32 %v1225, %v1688
        %1690 = vmatprep.mubr.bf16.mxu0 %v1133
        %1691 = vmatmul.mubr.bf16.gmra.mrb[0].mxu0 %v1132
        %v1692 = vpop.f32.mrb[0].mxu0
        %v1693 = vadd.f32 %v1221, %v1692
        %v1694 = vpop.f32.mrb[0].mxu0
        %v1695 = vadd.f32 %v1225, %v1694
        %v1696 = vpop.f32.mrb[0].mxu0
        %v1697 = vadd.f32 %v1221, %v1696
        %v1698 = vpop.f32.mrb[0].mxu0
        %v1699 = vadd.f32 %v1225, %v1698
        %1700 = vmatprep.mubr.bf16.mxu0 %v1137
        %1701 = vmatmul.mubr.bf16.gmra.mrb[0].mxu0 %v1136
        %v1702 = vpop.f32.mrb[0].mxu0
        %v1703 = vadd.f32 %v1221, %v1702
        %v1704 = vpop.f32.mrb[0].mxu0
        %v1705 = vadd.f32 %v1225, %v1704
        %v1706 = vpop.f32.mrb[0].mxu0
        %v1707 = vadd.f32 %v1221, %v1706
        %v1708 = vpop.f32.mrb[0].mxu0
        %v1709 = vadd.f32 %v1225, %v1708
        %1710 = vmatprep.mubr.bf16.mxu0 %v1141
        %1711 = vmatmul.mubr.bf16.gmra.mrb[0].mxu0 %v1140
        %v1712 = vpop.f32.mrb[0].mxu0
        %v1713 = vadd.f32 %v1221, %v1712
        %v1714 = vpop.f32.mrb[0].mxu0
        %v1715 = vadd.f32 %v1225, %v1714
        %v1716 = vpop.f32.mrb[0].mxu0
        %v1717 = vadd.f32 %v1221, %v1716
        %v1718 = vpop.f32.mrb[0].mxu0
        %v1719 = vadd.f32 %v1225, %v1718
        %1720 = vmatprep.mubr.bf16.mxu0 %v1145
        %1721 = vmatmul.mubr.bf16.gmra.mrb[0].mxu0 %v1144
        %v1722 = vpop.f32.mrb[0].mxu0
        %v1723 = vadd.f32 %v1221, %v1722
        %v1724 = vpop.f32.mrb[0].mxu0
        %v1725 = vadd.f32 %v1225, %v1724
        %v1726 = vpop.f32.mrb[0].mxu0
        %v1727 = vadd.f32 %v1221, %v1726
        %v1728 = vpop.f32.mrb[0].mxu0
        %v1729 = vadd.f32 %v1225, %v1728
        %1730 = vmatprep.mubr.bf16.mxu0 %v1149
        %1731 = vmatmul.mubr.bf16.gmra.mrb[0].mxu0 %v1148
        %v1732 = vpop.f32.mrb[0].mxu0
        %v1733 = vadd.f32 %v1221, %v1732
        %v1734 = vpop.f32.mrb[0].mxu0
        %v1735 = vadd.f32 %v1225, %v1734
        %v1736 = vpop.f32.mrb[0].mxu0
        %v1737 = vadd.f32 %v1221, %v1736
        %v1738 = vpop.f32.mrb[0].mxu0
        %v1739 = vadd.f32 %v1225, %v1738
        %1740 = vdwg.mxu0
        %1741 = vmatprep.subr.bf16.mxu0 %v1453
        %1742 = vmatpush1.bf16.msra.mxu0 %v1452
        %1743 = vmatprep.subr.bf16.mxu0 %v1455
        %1744 = vmatpush1.bf16.msra.mxu0 %v1454
        %1745 = vmatprep.subr.bf16.mxu0 %v1457
        %1746 = vmatpush1.bf16.msra.mxu0 %v1456
        %1747 = vmatprep.subr.bf16.mxu0 %v1459
        %1748 = vmatpush1.bf16.msra.mxu0 %v1458
        %1749 = vmatprep.subr.bf16.mxu0 %v1461
        %1750 = vmatpush1.bf16.msra.mxu0 %v1460
        %1751 = vmatprep.subr.bf16.mxu0 %v1463
        %1752 = vmatpush1.bf16.msra.mxu0 %v1462
        %1753 = vmatprep.subr.bf16.mxu0 %v1465
        %1754 = vmatpush1.bf16.msra.mxu0 %v1464
        %1755 = vmatprep.subr.bf16.mxu0 %v1467
        %1756 = vmatpush1.bf16.msra.mxu0 %v1466
        %1757 = vmatprep.subr.bf16.mxu0 %v1469
        %1758 = vmatpush1.bf16.msra.mxu0 %v1468
        %1759 = vmatprep.subr.bf16.mxu0 %v1471
        %1760 = vmatpush1.bf16.msra.mxu0 %v1470
        %1761 = vmatprep.subr.bf16.mxu0 %v1473
        %1762 = vmatpush1.bf16.msra.mxu0 %v1472
        %1763 = vmatprep.subr.bf16.mxu0 %v1475
        %1764 = vmatpush1.bf16.msra.mxu0 %v1474
        %1765 = vmatprep.subr.bf16.mxu0 %v1477
        %1766 = vmatpush1.bf16.msra.mxu0 %v1476
        %1767 = vmatprep.subr.bf16.mxu0 %v1479
        %1768 = vmatpush1.bf16.msra.mxu0 %v1478
        %1769 = vmatprep.subr.bf16.mxu0 %v1481
        %1770 = vmatpush1.bf16.msra.mxu0 %v1480
        %1771 = vmatprep.subr.bf16.mxu0 %v1483
        %1772 = vmatpush1.bf16.msra.mxu0 %v1482
        %1773 = vmatprep.mubr.bf16.mxu0 %v1091
        %1774 = vmatmul.mubr.bf16.gmra.mrb[0].mxu0 %v1090
        %v1775 = vpop.f32.mrb[0].mxu0
        %v1776 = vadd.f32 %v1583, %v1775
        %v1777 = vpop.f32.mrb[0].mxu0
        %v1778 = vadd.f32 %v1585, %v1777
        %v1779 = vpop.f32.mrb[0].mxu0
        %v1780 = vadd.f32 %v1587, %v1779
        %v1781 = vpop.f32.mrb[0].mxu0
        %v1782 = vadd.f32 %v1589, %v1781
        %1783 = vmatprep.mubr.bf16.mxu0 %v1095
        %1784 = vmatmul.mubr.bf16.gmra.mrb[0].mxu0 %v1094
        %v1785 = vpop.f32.mrb[0].mxu0
        %v1786 = vadd.f32 %v1593, %v1785
        %v1787 = vpop.f32.mrb[0].mxu0
        %v1788 = vadd.f32 %v1595, %v1787
        %v1789 = vpop.f32.mrb[0].mxu0
        %v1790 = vadd.f32 %v1597, %v1789
        %v1791 = vpop.f32.mrb[0].mxu0
        %v1792 = vadd.f32 %v1599, %v1791
        %1793 = vmatprep.mubr.bf16.mxu0 %v1099
        %1794 = vmatmul.mubr.bf16.gmra.mrb[0].mxu0 %v1098
        %v1795 = vpop.f32.mrb[0].mxu0
        %v1796 = vadd.f32 %v1603, %v1795
        %v1797 = vpop.f32.mrb[0].mxu0
        %v1798 = vadd.f32 %v1605, %v1797
        %v1799 = vpop.f32.mrb[0].mxu0
        %v1800 = vadd.f32 %v1607, %v1799
        %v1801 = vpop.f32.mrb[0].mxu0
        %v1802 = vadd.f32 %v1609, %v1801
        %1803 = vmatprep.mubr.bf16.mxu0 %v1103
        %1804 = vmatmul.mubr.bf16.gmra.mrb[0].mxu0 %v1102
        %v1805 = vpop.f32.mrb[0].mxu0
        %v1806 = vadd.f32 %v1613, %v1805
        %v1807 = vpop.f32.mrb[0].mxu0
        %v1808 = vadd.f32 %v1615, %v1807
        %v1809 = vpop.f32.mrb[0].mxu0
        %v1810 = vadd.f32 %v1617, %v1809
        %v1811 = vpop.f32.mrb[0].mxu0
        %v1812 = vadd.f32 %v1619, %v1811
        %1813 = vmatprep.mubr.bf16.mxu0 %v1107
        %1814 = vmatmul.mubr.bf16.gmra.mrb[0].mxu0 %v1106
        %v1815 = vpop.f32.mrb[0].mxu0
        %v1816 = vadd.f32 %v1623, %v1815
        %v1817 = vpop.f32.mrb[0].mxu0
        %v1818 = vadd.f32 %v1625, %v1817
        %v1819 = vpop.f32.mrb[0].mxu0
        %v1820 = vadd.f32 %v1627, %v1819
        %v1821 = vpop.f32.mrb[0].mxu0
        %v1822 = vadd.f32 %v1629, %v1821
        %1823 = vmatprep.mubr.bf16.mxu0 %v1111
        %1824 = vmatmul.mubr.bf16.gmra.mrb[0].mxu0 %v1110
        %v1825 = vpop.f32.mrb[0].mxu0
        %v1826 = vadd.f32 %v1633, %v1825
        %v1827 = vpop.f32.mrb[0].mxu0
        %v1828 = vadd.f32 %v1635, %v1827
        %v1829 = vpop.f32.mrb[0].mxu0
        %v1830 = vadd.f32 %v1637, %v1829
        %v1831 = vpop.f32.mrb[0].mxu0
        %v1832 = vadd.f32 %v1639, %v1831
        %1833 = vmatprep.mubr.bf16.mxu0 %v1115
        %1834 = vmatmul.mubr.bf16.gmra.mrb[0].mxu0 %v1114
        %v1835 = vpop.f32.mrb[0].mxu0
        %v1836 = vadd.f32 %v1643, %v1835
        %v1837 = vpop.f32.mrb[0].mxu0
        %v1838 = vadd.f32 %v1645, %v1837
        %v1839 = vpop.f32.mrb[0].mxu0
        %v1840 = vadd.f32 %v1647, %v1839
        %v1841 = vpop.f32.mrb[0].mxu0
        %v1842 = vadd.f32 %v1649, %v1841
        %1843 = vmatprep.mubr.bf16.mxu0 %v1119
        %1844 = vmatmul.mubr.bf16.gmra.mrb[0].mxu0 %v1118
        %v1845 = vpop.f32.mrb[0].mxu0
        %v1846 = vadd.f32 %v1653, %v1845
        %v1847 = vpop.f32.mrb[0].mxu0
        %v1848 = vadd.f32 %v1655, %v1847
        %v1849 = vpop.f32.mrb[0].mxu0
        %v1850 = vadd.f32 %v1657, %v1849
        %v1851 = vpop.f32.mrb[0].mxu0
        %v1852 = vadd.f32 %v1659, %v1851
        %1853 = vmatprep.mubr.bf16.mxu0 %v1123
        %1854 = vmatmul.mubr.bf16.gmra.mrb[0].mxu0 %v1122
        %v1855 = vpop.f32.mrb[0].mxu0
        %v1856 = vadd.f32 %v1663, %v1855
        %v1857 = vpop.f32.mrb[0].mxu0
        %v1858 = vadd.f32 %v1665, %v1857
        %v1859 = vpop.f32.mrb[0].mxu0
        %v1860 = vadd.f32 %v1667, %v1859
        %v1861 = vpop.f32.mrb[0].mxu0
        %v1862 = vadd.f32 %v1669, %v1861
        %1863 = vmatprep.mubr.bf16.mxu0 %v1127
        %1864 = vmatmul.mubr.bf16.gmra.mrb[0].mxu0 %v1126
        %v1865 = vpop.f32.mrb[0].mxu0
        %v1866 = vadd.f32 %v1673, %v1865
        %v1867 = vpop.f32.mrb[0].mxu0
        %v1868 = vadd.f32 %v1675, %v1867
        %v1869 = vpop.f32.mrb[0].mxu0
        %v1870 = vadd.f32 %v1677, %v1869
        %v1871 = vpop.f32.mrb[0].mxu0
        %v1872 = vadd.f32 %v1679, %v1871
        %1873 = vmatprep.mubr.bf16.mxu0 %v1131
        %1874 = vmatmul.mubr.bf16.gmra.mrb[0].mxu0 %v1130
        %v1875 = vpop.f32.mrb[0].mxu0
        %v1876 = vadd.f32 %v1683, %v1875
        %v1877 = vpop.f32.mrb[0].mxu0
        %v1878 = vadd.f32 %v1685, %v1877
        %v1879 = vpop.f32.mrb[0].mxu0
        %v1880 = vadd.f32 %v1687, %v1879
        %v1881 = vpop.f32.mrb[0].mxu0
        %v1882 = vadd.f32 %v1689, %v1881
        %1883 = vmatprep.mubr.bf16.mxu0 %v1135
        %1884 = vmatmul.mubr.bf16.gmra.mrb[0].mxu0 %v1134
        %v1885 = vpop.f32.mrb[0].mxu0
        %v1886 = vadd.f32 %v1693, %v1885
        %v1887 = vpop.f32.mrb[0].mxu0
        %v1888 = vadd.f32 %v1695, %v1887
        %v1889 = vpop.f32.mrb[0].mxu0
        %v1890 = vadd.f32 %v1697, %v1889
        %v1891 = vpop.f32.mrb[0].mxu0
        %v1892 = vadd.f32 %v1699, %v1891
        %1893 = vmatprep.mubr.bf16.mxu0 %v1139
        %1894 = vmatmul.mubr.bf16.gmra.mrb[0].mxu0 %v1138
        %v1895 = vpop.f32.mrb[0].mxu0
        %v1896 = vadd.f32 %v1703, %v1895
        %v1897 = vpop.f32.mrb[0].mxu0
        %v1898 = vadd.f32 %v1705, %v1897
        %v1899 = vpop.f32.mrb[0].mxu0
        %v1900 = vadd.f32 %v1707, %v1899
        %v1901 = vpop.f32.mrb[0].mxu0
        %v1902 = vadd.f32 %v1709, %v1901
        %1903 = vmatprep.mubr.bf16.mxu0 %v1143
        %1904 = vmatmul.mubr.bf16.gmra.mrb[0].mxu0 %v1142
        %v1905 = vpop.f32.mrb[0].mxu0
        %v1906 = vadd.f32 %v1713, %v1905
        %v1907 = vpop.f32.mrb[0].mxu0
        %v1908 = vadd.f32 %v1715, %v1907
        %v1909 = vpop.f32.mrb[0].mxu0
        %v1910 = vadd.f32 %v1717, %v1909
        %v1911 = vpop.f32.mrb[0].mxu0
        %v1912 = vadd.f32 %v1719, %v1911
        %1913 = vmatprep.mubr.bf16.mxu0 %v1147
        %1914 = vmatmul.mubr.bf16.gmra.mrb[0].mxu0 %v1146
        %v1915 = vpop.f32.mrb[0].mxu0
        %v1916 = vadd.f32 %v1723, %v1915
        %v1917 = vpop.f32.mrb[0].mxu0
        %v1918 = vadd.f32 %v1725, %v1917
        %v1919 = vpop.f32.mrb[0].mxu0
        %v1920 = vadd.f32 %v1727, %v1919
        %v1921 = vpop.f32.mrb[0].mxu0
        %v1922 = vadd.f32 %v1729, %v1921
        %1923 = vmatprep.mubr.bf16.mxu0 %v1151
        %1924 = vmatmul.mubr.bf16.gmra.mrb[0].mxu0 %v1150
        %v1925 = vpop.f32.mrb[0].mxu0
        %v1926 = vadd.f32 %v1733, %v1925
        %v1927 = vpop.f32.mrb[0].mxu0
        %v1928 = vadd.f32 %v1735, %v1927
        %v1929 = vpop.f32.mrb[0].mxu0
        %v1930 = vadd.f32 %v1737, %v1929
        %v1931 = vpop.f32.mrb[0].mxu0
        %v1932 = vadd.f32 %v1739, %v1931
        %1933 = vdwg.mxu0
        %v1934 = vmul.f32 %v1776, 0.01
        %v1935 = vmul.f32 %v1778, 0.01
        %v1936 = vmul.f32 %v1780, 0.01
        %v1937 = vmul.f32 %v1782, 0.01
        %v1938 = vmul.f32 %v1786, 0.01
        %v1939 = vmul.f32 %v1788, 0.01
        %v1940 = vmul.f32 %v1790, 0.01
        %v1941 = vmul.f32 %v1792, 0.01
        %v1942 = vmul.f32 %v1796, 0.01
        %v1943 = vmul.f32 %v1798, 0.01
        %v1944 = vmul.f32 %v1800, 0.01
        %v1945 = vmul.f32 %v1802, 0.01
        %v1946 = vmul.f32 %v1806, 0.01
        %v1947 = vmul.f32 %v1808, 0.01
        %v1948 = vmul.f32 %v1810, 0.01
        %v1949 = vmul.f32 %v1812, 0.01
        %v1950 = vmul.f32 %v1816, 0.01
        %v1951 = vmul.f32 %v1818, 0.01
        %v1952 = vmul.f32 %v1820, 0.01
        %v1953 = vmul.f32 %v1822, 0.01
        %v1954 = vmul.f32 %v1826, 0.01
        %v1955 = vmul.f32 %v1828, 0.01
        %v1956 = vmul.f32 %v1830, 0.01
        %v1957 = vmul.f32 %v1832, 0.01
        %v1958 = vmul.f32 %v1836, 0.01
        %v1959 = vmul.f32 %v1838, 0.01
        %v1960 = vmul.f32 %v1840, 0.01
        %v1961 = vmul.f32 %v1842, 0.01
        %v1962 = vmul.f32 %v1846, 0.01
        %v1963 = vmul.f32 %v1848, 0.01
        %v1964 = vmul.f32 %v1850, 0.01
        %v1965 = vmul.f32 %v1852, 0.01
        %v1966 = vmul.f32 %v1856, 0.01
        %v1967 = vmul.f32 %v1858, 0.01
        %v1968 = vmul.f32 %v1860, 0.01
        %v1969 = vmul.f32 %v1862, 0.01
        %v1970 = vmul.f32 %v1866, 0.01
        %v1971 = vmul.f32 %v1868, 0.01
        %v1972 = vmul.f32 %v1870, 0.01
        %v1973 = vmul.f32 %v1872, 0.01
        %v1974 = vmul.f32 %v1876, 0.01
        %v1975 = vmul.f32 %v1878, 0.01
        %v1976 = vmul.f32 %v1880, 0.01
        %v1977 = vmul.f32 %v1882, 0.01
        %v1978 = vmul.f32 %v1886, 0.01
        %v1979 = vmul.f32 %v1888, 0.01
        %v1980 = vmul.f32 %v1890, 0.01
        %v1981 = vmul.f32 %v1892, 0.01
        %v1982 = vmul.f32 %v1896, 0.01
        %v1983 = vmul.f32 %v1898, 0.01
        %v1984 = vmul.f32 %v1900, 0.01
        %v1985 = vmul.f32 %v1902, 0.01
        %v1986 = vmul.f32 %v1906, 0.01
        %v1987 = vmul.f32 %v1908, 0.01
        %v1988 = vmul.f32 %v1910, 0.01
        %v1989 = vmul.f32 %v1912, 0.01
        %v1990 = vmul.f32 %v1916, 0.01
        %v1991 = vmul.f32 %v1918, 0.01
        %v1992 = vmul.f32 %v1920, 0.01
        %v1993 = vmul.f32 %v1922, 0.01
        %v1994 = vmul.f32 %v1926, 0.01
        %v1995 = vmul.f32 %v1928, 0.01
        %v1996 = vmul.f32 %v1930, 0.01
        %v1997 = vmul.f32 %v1932, 0.01
        %v1998 = vmax.f32 %v1776, %v1934
        %v1999 = vmax.f32 %v1778, %v1935
        %v2000 = vmax.f32 %v1780, %v1936
        %v2001 = vmax.f32 %v1782, %v1937
        %v2002 = vmax.f32 %v1786, %v1938
        %v2003 = vmax.f32 %v1788, %v1939
        %v2004 = vmax.f32 %v1790, %v1940
        %v2005 = vmax.f32 %v1792, %v1941
        %v2006 = vmax.f32 %v1796, %v1942
        %v2007 = vmax.f32 %v1798, %v1943
        %v2008 = vmax.f32 %v1800, %v1944
        %v2009 = vmax.f32 %v1802, %v1945
        %v2010 = vmax.f32 %v1806, %v1946
        %v2011 = vmax.f32 %v1808, %v1947
        %v2012 = vmax.f32 %v1810, %v1948
        %v2013 = vmax.f32 %v1812, %v1949
        %v2014 = vmax.f32 %v1816, %v1950
        %v2015 = vmax.f32 %v1818, %v1951
        %v2016 = vmax.f32 %v1820, %v1952
        %v2017 = vmax.f32 %v1822, %v1953
        %v2018 = vmax.f32 %v1826, %v1954
        %v2019 = vmax.f32 %v1828, %v1955
        %v2020 = vmax.f32 %v1830, %v1956
        %v2021 = vmax.f32 %v1832, %v1957
        %v2022 = vmax.f32 %v1836, %v1958
        %v2023 = vmax.f32 %v1838, %v1959
        %v2024 = vmax.f32 %v1840, %v1960
        %v2025 = vmax.f32 %v1842, %v1961
        %v2026 = vmax.f32 %v1846, %v1962
        %v2027 = vmax.f32 %v1848, %v1963
        %v2028 = vmax.f32 %v1850, %v1964
        %v2029 = vmax.f32 %v1852, %v1965
        %v2030 = vmax.f32 %v1856, %v1966
        %v2031 = vmax.f32 %v1858, %v1967
        %v2032 = vmax.f32 %v1860, %v1968
        %v2033 = vmax.f32 %v1862, %v1969
        %v2034 = vmax.f32 %v1866, %v1970
        %v2035 = vmax.f32 %v1868, %v1971
        %v2036 = vmax.f32 %v1870, %v1972
        %v2037 = vmax.f32 %v1872, %v1973
        %v2038 = vmax.f32 %v1876, %v1974
        %v2039 = vmax.f32 %v1878, %v1975
        %v2040 = vmax.f32 %v1880, %v1976
        %v2041 = vmax.f32 %v1882, %v1977
        %v2042 = vmax.f32 %v1886, %v1978
        %v2043 = vmax.f32 %v1888, %v1979
        %v2044 = vmax.f32 %v1890, %v1980
        %v2045 = vmax.f32 %v1892, %v1981
        %v2046 = vmax.f32 %v1896, %v1982
        %v2047 = vmax.f32 %v1898, %v1983
        %v2048 = vmax.f32 %v1900, %v1984
        %v2049 = vmax.f32 %v1902, %v1985
        %v2050 = vmax.f32 %v1906, %v1986
        %v2051 = vmax.f32 %v1908, %v1987
        %v2052 = vmax.f32 %v1910, %v1988
        %v2053 = vmax.f32 %v1912, %v1989
        %v2054 = vmax.f32 %v1916, %v1990
        %v2055 = vmax.f32 %v1918, %v1991
        %v2056 = vmax.f32 %v1920, %v1992
        %v2057 = vmax.f32 %v1922, %v1993
        %v2058 = vmax.f32 %v1926, %v1994
        %v2059 = vmax.f32 %v1928, %v1995
        %v2060 = vmax.f32 %v1930, %v1996
        %v2061 = vmax.f32 %v1932, %v1997
        %2062 = vst [vmem:[%s218] sm:$0xff] %v1998
        %2063 = vst [vmem:[%s218 + $0x8] sm:$0xff] %v1999
        %2064 = vst [vmem:[%s218 + $0x10] sm:$0xff] %v2000
        %2065 = vst [vmem:[%s218 + $0x18] sm:$0xff] %v2001
        %2066 = vst [vmem:[%s218 + $0x20] sm:$0xff] %v2002
        %2067 = vst [vmem:[%s218 + $0x28] sm:$0xff] %v2003
        %2068 = vst [vmem:[%s218 + $0x30] sm:$0xff] %v2004
        %2069 = vst [vmem:[%s218 + $0x38] sm:$0xff] %v2005
        %2070 = vst [vmem:[%s218 + $0x40] sm:$0xff] %v2006
        %2071 = vst [vmem:[%s218 + $0x48] sm:$0xff] %v2007
        %2072 = vst [vmem:[%s218 + $0x50] sm:$0xff] %v2008
        %2073 = vst [vmem:[%s218 + $0x58] sm:$0xff] %v2009
        %2074 = vst [vmem:[%s218 + $0x60] sm:$0xff] %v2010
        %2075 = vst [vmem:[%s218 + $0x68] sm:$0xff] %v2011
        %2076 = vst [vmem:[%s218 + $0x70] sm:$0xff] %v2012
        %2077 = vst [vmem:[%s218 + $0x78] sm:$0xff] %v2013
        %2078 = vst [vmem:[%s218 + $0x80] sm:$0xff] %v2014
        %2079 = vst [vmem:[%s218 + $0x88] sm:$0xff] %v2015
        %2080 = vst [vmem:[%s218 + $0x90] sm:$0xff] %v2016
        %2081 = vst [vmem:[%s218 + $0x98] sm:$0xff] %v2017
        %2082 = vst [vmem:[%s218 + $0xa0] sm:$0xff] %v2018
        %2083 = vst [vmem:[%s218 + $0xa8] sm:$0xff] %v2019
        %2084 = vst [vmem:[%s218 + $0xb0] sm:$0xff] %v2020
        %2085 = vst [vmem:[%s218 + $0xb8] sm:$0xff] %v2021
        %2086 = vst [vmem:[%s218 + $0xc0] sm:$0xff] %v2022
        %2087 = vst [vmem:[%s218 + $0xc8] sm:$0xff] %v2023
        %2088 = vst [vmem:[%s218 + $0xd0] sm:$0xff] %v2024
        %2089 = vst [vmem:[%s218 + $0xd8] sm:$0xff] %v2025
        %2090 = vst [vmem:[%s218 + $0xe0] sm:$0xff] %v2026
        %2091 = vst [vmem:[%s218 + $0xe8] sm:$0xff] %v2027
        %2092 = vst [vmem:[%s218 + $0xf0] sm:$0xff] %v2028
        %2093 = vst [vmem:[%s218 + $0xf8] sm:$0xff] %v2029
        %2094 = vst [vmem:[%s218 + $0x100] sm:$0xff] %v2030
        %2095 = vst [vmem:[%s218 + $0x108] sm:$0xff] %v2031
        %2096 = vst [vmem:[%s218 + $0x110] sm:$0xff] %v2032
        %2097 = vst [vmem:[%s218 + $0x118] sm:$0xff] %v2033
        %2098 = vst [vmem:[%s218 + $0x120] sm:$0xff] %v2034
        %2099 = vst [vmem:[%s218 + $0x128] sm:$0xff] %v2035
        %2100 = vst [vmem:[%s218 + $0x130] sm:$0xff] %v2036
        %2101 = vst [vmem:[%s218 + $0x138] sm:$0xff] %v2037
        %2102 = vst [vmem:[%s218 + $0x140] sm:$0xff] %v2038
        %2103 = vst [vmem:[%s218 + $0x148] sm:$0xff] %v2039
        %2104 = vst [vmem:[%s218 + $0x150] sm:$0xff] %v2040
        %2105 = vst [vmem:[%s218 + $0x158] sm:$0xff] %v2041
        %2106 = vst [vmem:[%s218 + $0x160] sm:$0xff] %v2042
        %2107 = vst [vmem:[%s218 + $0x168] sm:$0xff] %v2043
        %2108 = vst [vmem:[%s218 + $0x170] sm:$0xff] %v2044
        %2109 = vst [vmem:[%s218 + $0x178] sm:$0xff] %v2045
        %2110 = vst [vmem:[%s218 + $0x180] sm:$0xff] %v2046
        %2111 = vst [vmem:[%s218 + $0x188] sm:$0xff] %v2047
        %2112 = vst [vmem:[%s218 + $0x190] sm:$0xff] %v2048
        %2113 = vst [vmem:[%s218 + $0x198] sm:$0xff] %v2049
        %2114 = vst [vmem:[%s218 + $0x1a0] sm:$0xff] %v2050
        %2115 = vst [vmem:[%s218 + $0x1a8] sm:$0xff] %v2051
        %2116 = vst [vmem:[%s218 + $0x1b0] sm:$0xff] %v2052
        %2117 = vst [vmem:[%s218 + $0x1b8] sm:$0xff] %v2053
        %2118 = vst [vmem:[%s218 + $0x1c0] sm:$0xff] %v2054
        %2119 = vst [vmem:[%s218 + $0x1c8] sm:$0xff] %v2055
        %2120 = vst [vmem:[%s218 + $0x1d0] sm:$0xff] %v2056
        %2121 = vst [vmem:[%s218 + $0x1d8] sm:$0xff] %v2057
        %2122 = vst [vmem:[%s218 + $0x1e0] sm:$0xff] %v2058
        %2123 = vst [vmem:[%s218 + $0x1e8] sm:$0xff] %v2059
        %2124 = vst [vmem:[%s218 + $0x1f0] sm:$0xff] %v2060
        %2125 = vst [vmem:[%s218 + $0x1f8] sm:$0xff] %v2061
        %s2126 = sand.u32 %s137, 1
        %s2127 = scalar_lea.sflag [#allocation3], %s2126
        %s2128 = sand.u32 %s137, 1
        %s2129 = smul.addr %s2128, 512
        %s2130 = scalar_lea.vmem [#allocation2], %s2129
        // Predicated region
        $region41: #{predict_center_net.1} parent=39 // pred_check
          %p2131 = pneg %p147
        $region42: #{predict_center_net.1} parent=39 // pred_check_branch
          %2133 = sbr.rel (%p2131) target = $region44
        $region43: #{predict_center_net.1} parent=39 // pred_region
          %s2134 = smul.u32 32, %s19
          %s2136 = ssub.s32 8192, 8192
          %2137 = vsyncadd %s2127, %s2136
          %s2138 = smul.addr %s2134, 2
          %s2139 = smul.addr %s2138, 128
          %s2140 = scalar_lea.hbm %s5, %s2139
          %s2141 = sshll.u32 %s2130, 4
          %s2142 = int_to_ptr.vmem [resolvable:$true] %s2141
          %2147 = dma.vmem_to_hbm [thread:$0]  %s2142, 8192, %s2140, %s2127, 256, 256, 16
        $region44: #{predict_center_net.1} parent=39 // pred_fallthru
          _
      $region40: #{predict_center_net.1} parent=5 // pred_fallthru
        _
      %p2148 = scmp.le.s32.totalorder 2, %s14
      // Predicated region
      $region45: #{predict_center_net.1} parent=5 // pred_check
        %p2149 = pneg %p2148
      $region46: #{predict_center_net.1} parent=5 // pred_check_branch
        %2151 = sbr.rel (%p2149) target = $region48
      $region47: #{predict_center_net.1} parent=5 // pred_region
        %s2152 = ssub.s32 %s14, 2
        // Predicated region
        $region49: #{predict_center_net.1} parent=47 // pred_check
          %p2153 = pneg %p153
        $region50: #{predict_center_net.1} parent=47 // pred_check_branch
          %2155 = sbr.rel (%p2153) target = $region52
        $region51: #{predict_center_net.1} parent=47 // pred_region
          %s2156 = sand.u32 %s138, 1
          %s2157 = scalar_lea.sflag [#allocation3], %s2156
          %s2158 = sand.u32 %s138, 1
          %s2159 = smul.addr %s2158, 512
          %s2160 = scalar_lea.vmem [#allocation2], %s2159
          %2161 = dma.done %s2157, 8192
        $region52: #{predict_center_net.1} parent=47 // pred_fallthru
          _
      $region48: #{predict_center_net.1} parent=5 // pred_fallthru
        _
    $region6: #{predict_center_net.1} parent=1 // loop_footer
      %s18 = sadd.s32 1, %s14
    $region7: #{predict_center_net.1} parent=1 // loop_footer_branch
      %13 = sbr.rel target = $region3
    $region8: #{predict_center_net.1} parent=1 // loop_exit
      _
    %2162 = vsyncpa [#allocation3], 1
    %s2163 = scalar_lea.sflag [#allocation3], 1
    %2164 = vsyncpa %s2163, 1

</llo_original>
